<compile_context>
chip_gen: v7x
topology: tpu7x:2x2x1
jax: 0.10.0
libtpu: 0.0.40
codegen_flags: <defaults>
</compile_context>

<pallas_src>
import functools

import jax
import jax.numpy as jnp
from jax.experimental import pallas as pl
from jax.experimental.pallas import tpu as pltpu

EPS = 1e-5
OUT_PAD = 128  # fc4 output padded 10 -> 128 lanes (lane-dense store)

# Packed BN/bias vector block layout: (8, 512) f32, one row per vector,
# zero-padded lanes.
#   row 0: gamma1 (512)     row 1: beta1 (512)
#   row 2: gamma2 (256)     row 3: beta2 (256)
#   row 4: gamma3 (128)     row 5: beta3 (128)
#   row 6: fc4 bias padded to 128 lanes
#   row 7: unused (zeros)


def _bn_relu_fused(h, gamma, beta, inv_n, row_mask):
    """BatchNorm1d (training mode) + ReLU as one fused affine; returns bf16.

    `h` is f32 with any padded batch rows exactly zero (fc biases of layers
    feeding BN are elided, so zero rows stay zero), hence the sums over all
    rows equal the sums over the real rows; divide by the *real* batch size.
    """
    s = jnp.sum(h, axis=0, keepdims=True)
    s2 = jnp.sum(h * h, axis=0, keepdims=True)
    mean = s * inv_n
    # Biased variance (PyTorch BN training); clamp: single-pass E[h^2]-mean^2
    # can go slightly negative under f32 cancellation.
    var = jnp.maximum(s2 * inv_n - mean * mean, 0.0)
    scale = gamma * jax.lax.rsqrt(var + EPS)
    shift = beta - mean * scale
    a = jnp.maximum(h * scale + shift, 0.0)
    if row_mask is not None:
        a = a * row_mask  # keep padded rows exactly zero for the next layer's stats
    return a.astype(jnp.bfloat16)  # single cast; feeds the next MXU matmul directly


def fcn_bn_kernel(x_ref, w1_ref, w2_ref, w3_ref, w4_ref, vec_ref, o_ref, *, n_valid):
    bp = x_ref.shape[0]
    inv_n = jnp.float32(1.0 / n_valid)
    if bp == n_valid:
        row_mask = None
    else:
        rows = jax.lax.broadcasted_iota(jnp.int32, (bp, 1), 0)
        row_mask = (rows < n_valid).astype(jnp.float32)

    x = x_ref[...].astype(jnp.bfloat16)                      # cast folded into kernel

    # fc1 (bias elided: exactly cancelled by BN mean subtraction) -> BN1 -> ReLU
    h = jnp.dot(x, w1_ref[...], preferred_element_type=jnp.float32)
    a = _bn_relu_fused(h, vec_ref[0:1, :], vec_ref[1:2, :], inv_n, row_mask)

    # fc2 -> BN2 -> ReLU
    h = jnp.dot(a, w2_ref[...], preferred_element_type=jnp.float32)
    a = _bn_relu_fused(h, vec_ref[2:3, :256], vec_ref[3:4, :256], inv_n, row_mask)

    # fc3 -> BN3 -> ReLU
    h = jnp.dot(a, w3_ref[...], preferred_element_type=jnp.float32)
    a = _bn_relu_fused(h, vec_ref[4:5, :128], vec_ref[5:6, :128], inv_n, row_mask)

    # fc4 (padded to 128 lanes; real logits are columns [:10])
    o_ref[...] = (jnp.dot(a, w4_ref[...], preferred_element_type=jnp.float32)
                  + vec_ref[6:7, :OUT_PAD])


def init_params(key):
    """Full PyTorch-layout f32 params: (w,b) per fc stored as (in,out), plus
    BatchNorm1d gamma/beta defaults (1, 0) after fc1/fc2/fc3."""
    dims = [256, 512, 256, 128, 10]
    params = []
    for li in range(4):
        d_in, d_out = dims[li], dims[li + 1]
        key, wk, bk = jax.random.split(key, 3)
        scale = 1.0 / jnp.sqrt(jnp.float32(d_in))
        w = jax.random.uniform(wk, (d_in, d_out), jnp.float32, -1.0, 1.0) * scale
        b = jax.random.uniform(bk, (1, d_out), jnp.float32, -1.0, 1.0) * scale
        params += [w, b]
        if li < 3:
            params += [jnp.ones((1, d_out), jnp.float32),
                       jnp.zeros((1, d_out), jnp.float32)]
    return tuple(params)


def pack_params(params):
    """One-time conversion to the kernel layout:
      * fc weights in bf16 (MXU operand dtype),
      * fc1-3 biases dropped (BN removes constant shifts exactly),
      * fc4 weight/bias zero-padded to 128 output lanes,
      * all per-feature vectors packed into one (8, 512) f32 block (1 DMA)."""
    (w1, b1, g1, be1, w2, b2, g2, be2, w3, b3, g3, be3, w4, b4) = params
    del b1, b2, b3  # exactly cancelled by BatchNorm mean subtraction

    w4p = jnp.zeros((w4.shape[0], OUT_PAD), jnp.float32).at[:, :w4.shape[1]].set(w4)

    vecs = jnp.zeros((8, 512), jnp.float32)
    vecs = vecs.at[0, :512].set(g1.reshape(-1))
    vecs = vecs.at[1, :512].set(be1.reshape(-1))
    vecs = vecs.at[2, :256].set(g2.reshape(-1))
    vecs = vecs.at[3, :256].set(be2.reshape(-1))
    vecs = vecs.at[4, :128].set(g3.reshape(-1))
    vecs = vecs.at[5, :128].set(be3.reshape(-1))
    vecs = vecs.at[6, :b4.shape[1]].set(b4.reshape(-1))

    return (w1.astype(jnp.bfloat16),
            w2.astype(jnp.bfloat16),
            w3.astype(jnp.bfloat16),
            w4p.astype(jnp.bfloat16),
            vecs)


def fcn_bn_forward(x, packed_params):
    # Glue: x.view(x.size(0), -1)
    b = x.shape[0]
    x2d = x.reshape(b, -1)
    assert x2d.shape[1] == 256, "FCN_BN expects 256 flattened input features"
    # Whole batch resident (training-mode BN needs full-batch statistics).
    assert b <= 2048, "batch-tiled two-pass BN variant needed for large batches"

    if b % 8 == 0:
        # No pad, no cast, no copy -- x goes straight in; bf16 cast is in-kernel.
        x_in, bp = x2d, b
    else:
        # Pad to a multiple of 16 (bf16 packs 16 rows per sublane group);
        # padded rows stay exactly zero through every layer (row mask) and the
        # stats divide by the real batch size, so BN remains PyTorch-exact.
        bp = ((b + 15) // 16) * 16
        x_in = jnp.zeros((bp, 256), x2d.dtype).at[:b, :].set(x2d)

    w1, w2, w3, w4p, vecs = packed_params
    vmem = pl.BlockSpec(memory_space=pltpu.MemorySpace.VMEM)

    out_padded = pl.pallas_call(
        functools.partial(fcn_bn_kernel, n_valid=b),
        out_shape=jax.ShapeDtypeStruct((bp, OUT_PAD), jnp.float32),
        in_specs=[vmem] * 6,
        out_specs=vmem,
        compiler_params=pltpu.CompilerParams(vmem_limit_bytes=8 * 1024 * 1024),
    )(x_in, w1, w2, w3, w4p, vecs)
    return out_padded[:b, :10]


def _reference(x, params, matmul_dtype=jnp.float32):
    """Pure-JAX reference matching the PyTorch module (biases included,
    training-mode BN).  matmul_dtype lets us also build a reference at the
    kernel's bf16 matmul precision."""
    (w1, b1, g1, be1, w2, b2, g2, be2, w3, b3, g3, be3, w4, b4) = params
    h = x.reshape(x.shape[0], -1).astype(jnp.float32)

    def dot(a, w):
        return jnp.dot(a.astype(matmul_dtype), w.astype(matmul_dtype),
                       preferred_element_type=jnp.float32)

    def bn_relu(h, g, be):
        m = jnp.mean(h, axis=0, keepdims=True)
        v = jnp.mean((h - m) ** 2, axis=0, keepdims=True)
        return jnp.maximum((h - m) / jnp.sqrt(v + EPS) * g + be, 0.0)

    h = bn_relu(dot(h, w1) + b1, g1, be1)
    h = bn_relu(dot(h, w2) + b2, g2, be2)
    h = bn_relu(dot(h, w3) + b3, g3, be3)
    return dot(h, w4) + b4


if __name__ == "__main__":
    key = jax.random.PRNGKey(0)
    pkey, xkey = jax.random.split(key)

    params = init_params(pkey)        # PyTorch-layout f32 params (incl. b1-b3)
    packed = pack_params(params)      # kernel layout (bf16 weights, packed vectors)

    # Input mimics a 16x16 single-channel image batch; forward flattens to (B, 256).
    x = jax.random.normal(xkey, (8, 1, 16, 16), jnp.float32)

    # ---- case 1: batch multiple of 8 (no-pad fast path) ----
    out = jax.block_until_ready(fcn_bn_forward(x, packed))
    assert out.shape == (8, 10)
    ref_bf16 = _reference(x, params, matmul_dtype=jnp.bfloat16)
    assert jnp.allclose(out, ref_bf16, atol=5e-3, rtol=5e-3), \
        "mismatch vs bf16-precision reference (no-pad path)"
    ref_f32 = _reference(x, params, matmul_dtype=jnp.float32)
    assert jnp.allclose(out, ref_f32, atol=5e-2, rtol=5e-2), \
        "mismatch vs f32 reference (no-pad path)"

    # ---- case 2: ragged batch (exercises pad-to-16 + row-mask BN stats) ----
    x5 = x[:5]
    out5 = jax.block_until_ready(fcn_bn_forward(x5, packed))
    assert out5.shape == (5, 10)
    ref5_bf16 = _reference(x5, params, matmul_dtype=jnp.bfloat16)
    assert jnp.allclose(out5, ref5_bf16, atol=5e-3, rtol=5e-3), \
        "mismatch vs bf16-precision reference (padded path)"
    ref5_f32 = _reference(x5, params, matmul_dtype=jnp.float32)
    assert jnp.allclose(out5, ref5_f32, atol=5e-2, rtol=5e-2), \
        "mismatch vs f32 reference (padded path)"

    print("KERNEL_OK")
</pallas_src>

<mosaic_0001>
module attributes {stable_mosaic.version = 11 : i64} {
  func.func @fcn_bn_kernel(%arg0: memref<8x256xf32, #tpu.memory_space<vmem>>, %arg1: memref<256x512xbf16, #tpu.memory_space<vmem>>, %arg2: memref<512x256xbf16, #tpu.memory_space<vmem>>, %arg3: memref<256x128xbf16, #tpu.memory_space<vmem>>, %arg4: memref<128x128xbf16, #tpu.memory_space<vmem>>, %arg5: memref<8x512xf32, #tpu.memory_space<vmem>>, %arg6: memref<8x128xf32, #tpu.memory_space<vmem>>) attributes {dimension_semantics = [], scalar_prefetch = 0 : i64, scratch_operands = 0 : i64, tpu.core_type = #tpu.core_type<tc>} {
    %c0 = arith.constant 0 : index
    %c0_0 = arith.constant 0 : index
    %0 = vector.load %arg0[%c0, %c0_0] : memref<8x256xf32, #tpu.memory_space<vmem>>, vector<8x256xf32>
    %1 = arith.truncf %0 : vector<8x256xf32> to vector<8x256xbf16>
    %c0_1 = arith.constant 0 : index
    %c0_2 = arith.constant 0 : index
    %2 = vector.load %arg1[%c0_1, %c0_2] : memref<256x512xbf16, #tpu.memory_space<vmem>>, vector<256x512xbf16>
    %cst = arith.constant dense<0.000000e+00> : vector<8x512xf32>
    %3 = tpu.matmul %1, %2, %cst {dimension_numbers = #tpu.dot_dimension_numbers<[1], [0], [0], [1], [0, 0, 1, 1], [], []>} : vector<8x256xbf16>, vector<256x512xbf16>, vector<8x512xf32> -> vector<8x512xf32>
    %c0_3 = arith.constant 0 : index
    %c0_4 = arith.constant 0 : index
    %4 = vector.load %arg5[%c0_3, %c0_4] : memref<8x512xf32, #tpu.memory_space<vmem>>, vector<1x512xf32>
    %c1 = arith.constant 1 : index
    %c0_5 = arith.constant 0 : index
    %5 = vector.load %arg5[%c1, %c0_5] : memref<8x512xf32, #tpu.memory_space<vmem>>, vector<1x512xf32>
    %cst_6 = arith.constant dense<0.000000e+00> : vector<512xf32>
    %6 = vector.multi_reduction <add>, %3, %cst_6 [0] : vector<8x512xf32> to vector<512xf32>
    %7 = vector.shape_cast %6 : vector<512xf32> to vector<1x512xf32>
    %8 = arith.mulf %3, %3 : vector<8x512xf32>
    %cst_7 = arith.constant dense<0.000000e+00> : vector<512xf32>
    %9 = vector.multi_reduction <add>, %8, %cst_7 [0] : vector<8x512xf32> to vector<512xf32>
    %10 = vector.shape_cast %9 : vector<512xf32> to vector<1x512xf32>
    %cst_8 = arith.constant 1.250000e-01 : f32
    %11 = vector.broadcast %cst_8 : f32 to vector<1x512xf32>
    %12 = arith.mulf %7, %11 : vector<1x512xf32>
    %cst_9 = arith.constant 1.250000e-01 : f32
    %13 = vector.broadcast %cst_9 : f32 to vector<1x512xf32>
    %14 = arith.mulf %10, %13 : vector<1x512xf32>
    %15 = arith.mulf %12, %12 : vector<1x512xf32>
    %16 = arith.subf %14, %15 : vector<1x512xf32>
    %cst_10 = arith.constant 0.000000e+00 : f32
    %17 = vector.broadcast %cst_10 : f32 to vector<1x512xf32>
    %18 = arith.maximumf %16, %17 : vector<1x512xf32>
    %cst_11 = arith.constant 9.99999974E-6 : f32
    %19 = vector.broadcast %cst_11 : f32 to vector<1x512xf32>
    %20 = arith.addf %18, %19 : vector<1x512xf32>
    %21 = math.rsqrt %20 : vector<1x512xf32>
    %22 = arith.mulf %4, %21 : vector<1x512xf32>
    %23 = arith.mulf %12, %22 : vector<1x512xf32>
    %24 = arith.subf %5, %23 : vector<1x512xf32>
    %25 = vector.broadcast %22 : vector<1x512xf32> to vector<8x512xf32>
    %26 = arith.mulf %3, %25 : vector<8x512xf32>
    %27 = vector.broadcast %24 : vector<1x512xf32> to vector<8x512xf32>
    %28 = arith.addf %26, %27 : vector<8x512xf32>
    %cst_12 = arith.constant 0.000000e+00 : f32
    %29 = vector.broadcast %cst_12 : f32 to vector<8x512xf32>
    %30 = arith.maximumf %28, %29 : vector<8x512xf32>
    %31 = arith.truncf %30 : vector<8x512xf32> to vector<8x512xbf16>
    %c0_13 = arith.constant 0 : index
    %c0_14 = arith.constant 0 : index
    %32 = vector.load %arg2[%c0_13, %c0_14] : memref<512x256xbf16, #tpu.memory_space<vmem>>, vector<512x256xbf16>
    %cst_15 = arith.constant dense<0.000000e+00> : vector<8x256xf32>
    %33 = tpu.matmul %31, %32, %cst_15 {dimension_numbers = #tpu.dot_dimension_numbers<[1], [0], [0], [1], [0, 0, 1, 1], [], []>} : vector<8x512xbf16>, vector<512x256xbf16>, vector<8x256xf32> -> vector<8x256xf32>
    %c2 = arith.constant 2 : index
    %c0_16 = arith.constant 0 : index
    %34 = vector.load %arg5[%c2, %c0_16] : memref<8x512xf32, #tpu.memory_space<vmem>>, vector<1x256xf32>
    %c3 = arith.constant 3 : index
    %c0_17 = arith.constant 0 : index
    %35 = vector.load %arg5[%c3, %c0_17] : memref<8x512xf32, #tpu.memory_space<vmem>>, vector<1x256xf32>
    %cst_18 = arith.constant dense<0.000000e+00> : vector<256xf32>
    %36 = vector.multi_reduction <add>, %33, %cst_18 [0] : vector<8x256xf32> to vector<256xf32>
    %37 = vector.shape_cast %36 : vector<256xf32> to vector<1x256xf32>
    %38 = arith.mulf %33, %33 : vector<8x256xf32>
    %cst_19 = arith.constant dense<0.000000e+00> : vector<256xf32>
    %39 = vector.multi_reduction <add>, %38, %cst_19 [0] : vector<8x256xf32> to vector<256xf32>
    %40 = vector.shape_cast %39 : vector<256xf32> to vector<1x256xf32>
    %cst_20 = arith.constant 1.250000e-01 : f32
    %41 = vector.broadcast %cst_20 : f32 to vector<1x256xf32>
    %42 = arith.mulf %37, %41 : vector<1x256xf32>
    %cst_21 = arith.constant 1.250000e-01 : f32
    %43 = vector.broadcast %cst_21 : f32 to vector<1x256xf32>
    %44 = arith.mulf %40, %43 : vector<1x256xf32>
    %45 = arith.mulf %42, %42 : vector<1x256xf32>
    %46 = arith.subf %44, %45 : vector<1x256xf32>
    %cst_22 = arith.constant 0.000000e+00 : f32
    %47 = vector.broadcast %cst_22 : f32 to vector<1x256xf32>
    %48 = arith.maximumf %46, %47 : vector<1x256xf32>
    %cst_23 = arith.constant 9.99999974E-6 : f32
    %49 = vector.broadcast %cst_23 : f32 to vector<1x256xf32>
    %50 = arith.addf %48, %49 : vector<1x256xf32>
    %51 = math.rsqrt %50 : vector<1x256xf32>
    %52 = arith.mulf %34, %51 : vector<1x256xf32>
    %53 = arith.mulf %42, %52 : vector<1x256xf32>
    %54 = arith.subf %35, %53 : vector<1x256xf32>
    %55 = vector.broadcast %52 : vector<1x256xf32> to vector<8x256xf32>
    %56 = arith.mulf %33, %55 : vector<8x256xf32>
    %57 = vector.broadcast %54 : vector<1x256xf32> to vector<8x256xf32>
    %58 = arith.addf %56, %57 : vector<8x256xf32>
    %cst_24 = arith.constant 0.000000e+00 : f32
    %59 = vector.broadcast %cst_24 : f32 to vector<8x256xf32>
    %60 = arith.maximumf %58, %59 : vector<8x256xf32>
    %61 = arith.truncf %60 : vector<8x256xf32> to vector<8x256xbf16>
    %c0_25 = arith.constant 0 : index
    %c0_26 = arith.constant 0 : index
    %62 = vector.load %arg3[%c0_25, %c0_26] : memref<256x128xbf16, #tpu.memory_space<vmem>>, vector<256x128xbf16>
    %cst_27 = arith.constant dense<0.000000e+00> : vector<8x128xf32>
    %63 = tpu.matmul %61, %62, %cst_27 {dimension_numbers = #tpu.dot_dimension_numbers<[1], [0], [0], [1], [0, 0, 1, 1], [], []>} : vector<8x256xbf16>, vector<256x128xbf16>, vector<8x128xf32> -> vector<8x128xf32>
    %c4 = arith.constant 4 : index
    %c0_28 = arith.constant 0 : index
    %64 = vector.load %arg5[%c4, %c0_28] : memref<8x512xf32, #tpu.memory_space<vmem>>, vector<1x128xf32>
    %c5 = arith.constant 5 : index
    %c0_29 = arith.constant 0 : index
    %65 = vector.load %arg5[%c5, %c0_29] : memref<8x512xf32, #tpu.memory_space<vmem>>, vector<1x128xf32>
    %cst_30 = arith.constant dense<0.000000e+00> : vector<128xf32>
    %66 = vector.multi_reduction <add>, %63, %cst_30 [0] : vector<8x128xf32> to vector<128xf32>
    %67 = vector.shape_cast %66 : vector<128xf32> to vector<1x128xf32>
    %68 = arith.mulf %63, %63 : vector<8x128xf32>
    %cst_31 = arith.constant dense<0.000000e+00> : vector<128xf32>
    %69 = vector.multi_reduction <add>, %68, %cst_31 [0] : vector<8x128xf32> to vector<128xf32>
    %70 = vector.shape_cast %69 : vector<128xf32> to vector<1x128xf32>
    %cst_32 = arith.constant 1.250000e-01 : f32
    %71 = vector.broadcast %cst_32 : f32 to vector<1x128xf32>
    %72 = arith.mulf %67, %71 : vector<1x128xf32>
    %cst_33 = arith.constant 1.250000e-01 : f32
    %73 = vector.broadcast %cst_33 : f32 to vector<1x128xf32>
    %74 = arith.mulf %70, %73 : vector<1x128xf32>
    %75 = arith.mulf %72, %72 : vector<1x128xf32>
    %76 = arith.subf %74, %75 : vector<1x128xf32>
    %cst_34 = arith.constant 0.000000e+00 : f32
    %77 = vector.broadcast %cst_34 : f32 to vector<1x128xf32>
    %78 = arith.maximumf %76, %77 : vector<1x128xf32>
    %cst_35 = arith.constant 9.99999974E-6 : f32
    %79 = vector.broadcast %cst_35 : f32 to vector<1x128xf32>
    %80 = arith.addf %78, %79 : vector<1x128xf32>
    %81 = math.rsqrt %80 : vector<1x128xf32>
    %82 = arith.mulf %64, %81 : vector<1x128xf32>
    %83 = arith.mulf %72, %82 : vector<1x128xf32>
    %84 = arith.subf %65, %83 : vector<1x128xf32>
    %85 = vector.broadcast %82 : vector<1x128xf32> to vector<8x128xf32>
    %86 = arith.mulf %63, %85 : vector<8x128xf32>
    %87 = vector.broadcast %84 : vector<1x128xf32> to vector<8x128xf32>
    %88 = arith.addf %86, %87 : vector<8x128xf32>
    %cst_36 = arith.constant 0.000000e+00 : f32
    %89 = vector.broadcast %cst_36 : f32 to vector<8x128xf32>
    %90 = arith.maximumf %88, %89 : vector<8x128xf32>
    %91 = arith.truncf %90 : vector<8x128xf32> to vector<8x128xbf16>
    %c0_37 = arith.constant 0 : index
    %c0_38 = arith.constant 0 : index
    %92 = vector.load %arg4[%c0_37, %c0_38] : memref<128x128xbf16, #tpu.memory_space<vmem>>, vector<128x128xbf16>
    %cst_39 = arith.constant dense<0.000000e+00> : vector<8x128xf32>
    %93 = tpu.matmul %91, %92, %cst_39 {dimension_numbers = #tpu.dot_dimension_numbers<[1], [0], [0], [1], [0, 0, 1, 1], [], []>} : vector<8x128xbf16>, vector<128x128xbf16>, vector<8x128xf32> -> vector<8x128xf32>
    %c6 = arith.constant 6 : index
    %c0_40 = arith.constant 0 : index
    %94 = vector.load %arg5[%c6, %c0_40] : memref<8x512xf32, #tpu.memory_space<vmem>>, vector<1x128xf32>
    %95 = vector.broadcast %94 : vector<1x128xf32> to vector<8x128xf32>
    %96 = arith.addf %93, %95 : vector<8x128xf32>
    %c0_41 = arith.constant 0 : index
    %c0_42 = arith.constant 0 : index
    %97 = vector.load %arg6[%c0_41, %c0_42] : memref<8x128xf32, #tpu.memory_space<vmem>>, vector<8x128xf32>
    tpu.vector_store %arg6[%c0_41, %c0_42], %96 {strides = array<i32>} : memref<8x128xf32, #tpu.memory_space<vmem>>, vector<8x128xf32>,
    return
  }
}

</mosaic_0001>

<llo_original>
// kernel: tpu_custom_call.1
$region0: #{tpu_custom_call.1}
  #allocation0 [shape = 'u32[]', space=smem, size = 0x4, offset = 0x4, fixed_abs, tag = 'smem constant byte address 0x4 - core index']
  #allocation1 [shape = 'u32[144,128]{1,0:T(1,128)}', space=vmem, size = 0x12000, scoped, tag = 'internal scratch']
  %s0 = inlined_call_operand.hbm [shape: f32[8,256], index: 0, kind: input, shape index: {}]
  %s1 = inlined_call_operand.hbm [shape: bf16[256,512], index: 1, kind: input, shape index: {}]
  %s2 = inlined_call_operand.hbm [shape: bf16[512,256], index: 2, kind: input, shape index: {}]
  %s3 = inlined_call_operand.hbm [shape: bf16[256,128], index: 3, kind: input, shape index: {}]
  %s4 = inlined_call_operand.hbm [shape: bf16[128,128], index: 4, kind: input, shape index: {}]
  %s5 = inlined_call_operand.hbm [shape: f32[8,512], index: 5, kind: input, shape index: {}]
  %s6 = inlined_call_operand.hbm [shape: f32[8,128], index: 6, kind: output, shape index: {}]
  %s7 = sld [smem:[#allocation0]]
  $region58: #{tpu_custom_call.1} parent=0
    _
  %s9 = ssub.s32 1, %s7
  %s10 = scalar_select 0, %s9, %s7
  $region1: #{tpu_custom_call.1} parent=0
    #allocation2 [shape = 'u8[8192]{0}', space=vmem, size = 0x2000, scoped, tag = 'input window, operand 0, single buffered']
    #allocation3 [shape = 's32[1]{0}', space=sflag, size = 0x4, scoped, tag = 'scoped memory for tpu_custom_call.1']
    #allocation4 [shape = 's32[1]{0}', space=sflag, size = 0x4, scoped, tag = 'scoped memory for tpu_custom_call.1']
    #allocation5 [shape = 'u8[262144]{0}', space=vmem, size = 0x40000, scoped, tag = 'input window, operand 1, single buffered']
    #allocation6 [shape = 's32[1]{0}', space=sflag, size = 0x4, scoped, tag = 'scoped memory for tpu_custom_call.1']
    #allocation7 [shape = 'u8[262144]{0}', space=vmem, size = 0x40000, scoped, tag = 'input window, operand 2, single buffered']
    #allocation8 [shape = 'u8[65536]{0}', space=vmem, size = 0x10000, scoped, tag = 'input window, operand 3, single buffered']
    #allocation9 [shape = 's32[1]{0}', space=sflag, size = 0x4, scoped, tag = 'scoped memory for tpu_custom_call.1']
    #allocation10 [shape = 'u8[32768]{0}', space=vmem, size = 0x8000, scoped, tag = 'input window, operand 4, single buffered']
    #allocation11 [shape = 'u8[16384]{0}', space=vmem, size = 0x4000, scoped, tag = 'input window, operand 5, single buffered']
    #allocation12 [shape = 's32[1]{0}', space=sflag, size = 0x4, scoped, tag = 'scoped memory for tpu_custom_call.1']
    #allocation13 [shape = 'u8[4096]{0}', space=vmem, size = 0x1000, scoped, tag = 'output window, operand 0, single buffered']
    %11 = vsyncpa [#allocation3], 0
    %12 = vsyncpa [#allocation6], 0
    %13 = vsyncpa [#allocation9], 0
    %14 = vsyncpa [#allocation12], 0
    %15 = vsyncpa [#allocation4], 0
    // Predicated region
    $region2: #{tpu_custom_call.1} parent=1 // pred_check
      _
    $region3: #{tpu_custom_call.1} parent=1 // pred_check_branch
      %17 = sbr.rel (0) target = $region5
    $region4: #{tpu_custom_call.1} parent=1 // pred_region
      %s19 = ssub.s32 256, 256
      %20 = vsyncadd [#allocation3], %s19
      %s22 = sshll.u32 [#allocation2], 4
      %s23 = int_to_ptr.vmem [resolvable:$true] %s22
      %25 = dma.hbm_to_vmem [thread:$0]  %s0, 256, %s23, [#allocation3]
    $region5: #{tpu_custom_call.1} parent=1 // pred_fallthru
      _
    // Predicated region
    $region6: #{tpu_custom_call.1} parent=1 // pred_check
      _
    $region7: #{tpu_custom_call.1} parent=1 // pred_check_branch
      %27 = sbr.rel (0) target = $region9
    $region8: #{tpu_custom_call.1} parent=1 // pred_region
      %s29 = ssub.s32 8192, 8192
      %30 = vsyncadd [#allocation6], %s29
      %s31 = sshll.u32 [#allocation5], 4
      %s32 = int_to_ptr.vmem [resolvable:$true] %s31
      %37 = dma.hbm_to_vmem [thread:$0]  %s1, 8192, %s32, [#allocation6], 256, 256, 16
    $region9: #{tpu_custom_call.1} parent=1 // pred_fallthru
      _
    // Predicated region
    $region10: #{tpu_custom_call.1} parent=1 // pred_check
      _
    $region11: #{tpu_custom_call.1} parent=1 // pred_check_branch
      %39 = sbr.rel (0) target = $region13
    $region12: #{tpu_custom_call.1} parent=1 // pred_region
      %s41 = ssub.s32 8192, 8192
      %42 = vsyncadd [#allocation6], %s41
      %s43 = sshll.u32 [#allocation7], 4
      %s44 = int_to_ptr.vmem [resolvable:$true] %s43
      %49 = dma.hbm_to_vmem [thread:$0]  %s2, 8192, %s44, [#allocation6], 128, 128, 8
    $region13: #{tpu_custom_call.1} parent=1 // pred_fallthru
      _
    // Predicated region
    $region14: #{tpu_custom_call.1} parent=1 // pred_check
      _
    $region15: #{tpu_custom_call.1} parent=1 // pred_check_branch
      %51 = sbr.rel (0) target = $region17
    $region16: #{tpu_custom_call.1} parent=1 // pred_region
      %s53 = ssub.s32 2048, 2048
      %54 = vsyncadd [#allocation9], %s53
      %s55 = sshll.u32 [#allocation8], 4
      %s56 = int_to_ptr.vmem [resolvable:$true] %s55
      %61 = dma.hbm_to_vmem [thread:$0]  %s3, 2048, %s56, [#allocation9], 64, 64, 4
    $region17: #{tpu_custom_call.1} parent=1 // pred_fallthru
      _
    // Predicated region
    $region18: #{tpu_custom_call.1} parent=1 // pred_check
      _
    $region19: #{tpu_custom_call.1} parent=1 // pred_check_branch
      %63 = sbr.rel (0) target = $region21
    $region20: #{tpu_custom_call.1} parent=1 // pred_region
      %s65 = ssub.s32 1024, 1024
      %66 = vsyncadd [#allocation9], %s65
      %s67 = sshll.u32 [#allocation10], 4
      %s68 = int_to_ptr.vmem [resolvable:$true] %s67
      %73 = dma.hbm_to_vmem [thread:$0]  %s4, 1024, %s68, [#allocation9], 64, 64, 4
    $region21: #{tpu_custom_call.1} parent=1 // pred_fallthru
      _
    // Predicated region
    $region22: #{tpu_custom_call.1} parent=1 // pred_check
      _
    $region23: #{tpu_custom_call.1} parent=1 // pred_check_branch
      %75 = sbr.rel (0) target = $region25
    $region24: #{tpu_custom_call.1} parent=1 // pred_region
      %s77 = ssub.s32 512, 512
      %78 = vsyncadd [#allocation12], %s77
      %s80 = sshll.u32 [#allocation11], 4
      %s81 = int_to_ptr.vmem [resolvable:$true] %s80
      %83 = dma.hbm_to_vmem [thread:$0]  %s5, 512, %s81, [#allocation12]
    $region25: #{tpu_custom_call.1} parent=1 // pred_fallthru
      _
    // Predicated region
    $region26: #{tpu_custom_call.1} parent=1 // pred_check
      _
    $region27: #{tpu_custom_call.1} parent=1 // pred_check_branch
      %85 = sbr.rel (0) target = $region29
    $region28: #{tpu_custom_call.1} parent=1 // pred_region
      %86 = dma.done [#allocation3], 256
    $region29: #{tpu_custom_call.1} parent=1 // pred_fallthru
      _
    // Predicated region
    $region30: #{tpu_custom_call.1} parent=1 // pred_check
      _
    $region31: #{tpu_custom_call.1} parent=1 // pred_check_branch
      %88 = sbr.rel (0) target = $region33
    $region32: #{tpu_custom_call.1} parent=1 // pred_region
      %89 = dma.done [#allocation6], 8192
    $region33: #{tpu_custom_call.1} parent=1 // pred_fallthru
      _
    // Predicated region
    $region34: #{tpu_custom_call.1} parent=1 // pred_check
      _
    $region35: #{tpu_custom_call.1} parent=1 // pred_check_branch
      %91 = sbr.rel (0) target = $region37
    $region36: #{tpu_custom_call.1} parent=1 // pred_region
      %92 = dma.done [#allocation6], 8192
    $region37: #{tpu_custom_call.1} parent=1 // pred_fallthru
      _
    // Predicated region
    $region38: #{tpu_custom_call.1} parent=1 // pred_check
      _
    $region39: #{tpu_custom_call.1} parent=1 // pred_check_branch
      %94 = sbr.rel (0) target = $region41
    $region40: #{tpu_custom_call.1} parent=1 // pred_region
      %95 = dma.done [#allocation9], 2048
    $region41: #{tpu_custom_call.1} parent=1 // pred_fallthru
      _
    // Predicated region
    $region42: #{tpu_custom_call.1} parent=1 // pred_check
      _
    $region43: #{tpu_custom_call.1} parent=1 // pred_check_branch
      %97 = sbr.rel (0) target = $region45
    $region44: #{tpu_custom_call.1} parent=1 // pred_region
      %98 = dma.done [#allocation9], 1024
    $region45: #{tpu_custom_call.1} parent=1 // pred_fallthru
      _
    // Predicated region
    $region46: #{tpu_custom_call.1} parent=1 // pred_check
      _
    $region47: #{tpu_custom_call.1} parent=1 // pred_check_branch
      %100 = sbr.rel (0) target = $region49
    $region48: #{tpu_custom_call.1} parent=1 // pred_region
      %101 = dma.done [#allocation12], 512
    $region49: #{tpu_custom_call.1} parent=1 // pred_fallthru
      _
    %v103 = vld [vmem:[#allocation2] sm:$0xff]
    %v104 = vld [vmem:[#allocation2 + $0x8] sm:$0xff]
    %v105 = vpack.c.bf16 %v103, %v103
    %v106 = vpack.c.bf16 %v104, %v104
    %v107 = vld [vmem:[#allocation5] sm:$0xff]
    %v108 = vld [vmem:[#allocation5 + $0x8] sm:$0xff]
    %v109 = vld [vmem:[#allocation5 + $0x10] sm:$0xff]
    %v110 = vld [vmem:[#allocation5 + $0x18] sm:$0xff]
    %v111 = vld [vmem:[#allocation5 + $0x20] sm:$0xff]
    %v112 = vld [vmem:[#allocation5 + $0x28] sm:$0xff]
    %v113 = vld [vmem:[#allocation5 + $0x30] sm:$0xff]
    %v114 = vld [vmem:[#allocation5 + $0x38] sm:$0xff]
    %v115 = vld [vmem:[#allocation5 + $0x40] sm:$0xff]
    %v116 = vld [vmem:[#allocation5 + $0x48] sm:$0xff]
    %v117 = vld [vmem:[#allocation5 + $0x50] sm:$0xff]
    %v118 = vld [vmem:[#allocation5 + $0x58] sm:$0xff]
    %v119 = vld [vmem:[#allocation5 + $0x60] sm:$0xff]
    %v120 = vld [vmem:[#allocation5 + $0x68] sm:$0xff]
    %v121 = vld [vmem:[#allocation5 + $0x70] sm:$0xff]
    %v122 = vld [vmem:[#allocation5 + $0x78] sm:$0xff]
    %v123 = vld [vmem:[#allocation5 + $0x80] sm:$0xff]
    %v124 = vld [vmem:[#allocation5 + $0x88] sm:$0xff]
    %v125 = vld [vmem:[#allocation5 + $0x90] sm:$0xff]
    %v126 = vld [vmem:[#allocation5 + $0x98] sm:$0xff]
    %v127 = vld [vmem:[#allocation5 + $0xa0] sm:$0xff]
    %v128 = vld [vmem:[#allocation5 + $0xa8] sm:$0xff]
    %v129 = vld [vmem:[#allocation5 + $0xb0] sm:$0xff]
    %v130 = vld [vmem:[#allocation5 + $0xb8] sm:$0xff]
    %v131 = vld [vmem:[#allocation5 + $0xc0] sm:$0xff]
    %v132 = vld [vmem:[#allocation5 + $0xc8] sm:$0xff]
    %v133 = vld [vmem:[#allocation5 + $0xd0] sm:$0xff]
    %v134 = vld [vmem:[#allocation5 + $0xd8] sm:$0xff]
    %v135 = vld [vmem:[#allocation5 + $0xe0] sm:$0xff]
    %v136 = vld [vmem:[#allocation5 + $0xe8] sm:$0xff]
    %v137 = vld [vmem:[#allocation5 + $0xf0] sm:$0xff]
    %v138 = vld [vmem:[#allocation5 + $0xf8] sm:$0xff]
    %v139 = vld [vmem:[#allocation5 + $0x100] sm:$0xff]
    %v140 = vld [vmem:[#allocation5 + $0x108] sm:$0xff]
    %v141 = vld [vmem:[#allocation5 + $0x110] sm:$0xff]
    %v142 = vld [vmem:[#allocation5 + $0x118] sm:$0xff]
    %v143 = vld [vmem:[#allocation5 + $0x120] sm:$0xff]
    %v144 = vld [vmem:[#allocation5 + $0x128] sm:$0xff]
    %v145 = vld [vmem:[#allocation5 + $0x130] sm:$0xff]
    %v146 = vld [vmem:[#allocation5 + $0x138] sm:$0xff]
    %v147 = vld [vmem:[#allocation5 + $0x140] sm:$0xff]
    %v148 = vld [vmem:[#allocation5 + $0x148] sm:$0xff]
    %v149 = vld [vmem:[#allocation5 + $0x150] sm:$0xff]
    %v150 = vld [vmem:[#allocation5 + $0x158] sm:$0xff]
    %v151 = vld [vmem:[#allocation5 + $0x160] sm:$0xff]
    %v152 = vld [vmem:[#allocation5 + $0x168] sm:$0xff]
    %v153 = vld [vmem:[#allocation5 + $0x170] sm:$0xff]
    %v154 = vld [vmem:[#allocation5 + $0x178] sm:$0xff]
    %v155 = vld [vmem:[#allocation5 + $0x180] sm:$0xff]
    %v156 = vld [vmem:[#allocation5 + $0x188] sm:$0xff]
    %v157 = vld [vmem:[#allocation5 + $0x190] sm:$0xff]
    %v158 = vld [vmem:[#allocation5 + $0x198] sm:$0xff]
    %v159 = vld [vmem:[#allocation5 + $0x1a0] sm:$0xff]
    %v160 = vld [vmem:[#allocation5 + $0x1a8] sm:$0xff]
    %v161 = vld [vmem:[#allocation5 + $0x1b0] sm:$0xff]
    %v162 = vld [vmem:[#allocation5 + $0x1b8] sm:$0xff]
    %v163 = vld [vmem:[#allocation5 + $0x1c0] sm:$0xff]
    %v164 = vld [vmem:[#allocation5 + $0x1c8] sm:$0xff]
    %v165 = vld [vmem:[#allocation5 + $0x1d0] sm:$0xff]
    %v166 = vld [vmem:[#allocation5 + $0x1d8] sm:$0xff]
    %v167 = vld [vmem:[#allocation5 + $0x1e0] sm:$0xff]
    %v168 = vld [vmem:[#allocation5 + $0x1e8] sm:$0xff]
    %v169 = vld [vmem:[#allocation5 + $0x1f0] sm:$0xff]
    %v170 = vld [vmem:[#allocation5 + $0x1f8] sm:$0xff]
    %v235 = vunpack.c.l.b16 %v107
    %v236 = vunpack.c.h.b16 %v107
    %v237 = vunpack.c.l.b16 %v108
    %v238 = vunpack.c.h.b16 %v108
    %v239 = vunpack.c.l.b16 %v109
    %v240 = vunpack.c.h.b16 %v109
    %v241 = vunpack.c.l.b16 %v110
    %v242 = vunpack.c.h.b16 %v110
    %v243 = vunpack.c.l.b16 %v111
    %v244 = vunpack.c.h.b16 %v111
    %v245 = vunpack.c.l.b16 %v112
    %v246 = vunpack.c.h.b16 %v112
    %v247 = vunpack.c.l.b16 %v113
    %v248 = vunpack.c.h.b16 %v113
    %v249 = vunpack.c.l.b16 %v114
    %v250 = vunpack.c.h.b16 %v114
    %v251 = vunpack.c.l.b16 %v115
    %v252 = vunpack.c.h.b16 %v115
    %v253 = vunpack.c.l.b16 %v116
    %v254 = vunpack.c.h.b16 %v116
    %v255 = vunpack.c.l.b16 %v117
    %v256 = vunpack.c.h.b16 %v117
    %v257 = vunpack.c.l.b16 %v118
    %v258 = vunpack.c.h.b16 %v118
    %v259 = vunpack.c.l.b16 %v119
    %v260 = vunpack.c.h.b16 %v119
    %v261 = vunpack.c.l.b16 %v120
    %v262 = vunpack.c.h.b16 %v120
    %v263 = vunpack.c.l.b16 %v121
    %v264 = vunpack.c.h.b16 %v121
    %v265 = vunpack.c.l.b16 %v122
    %v266 = vunpack.c.h.b16 %v122
    %v267 = vunpack.c.l.b16 %v123
    %v268 = vunpack.c.h.b16 %v123
    %v269 = vunpack.c.l.b16 %v124
    %v270 = vunpack.c.h.b16 %v124
    %v271 = vunpack.c.l.b16 %v125
    %v272 = vunpack.c.h.b16 %v125
    %v273 = vunpack.c.l.b16 %v126
    %v274 = vunpack.c.h.b16 %v126
    %v275 = vunpack.c.l.b16 %v127
    %v276 = vunpack.c.h.b16 %v127
    %v277 = vunpack.c.l.b16 %v128
    %v278 = vunpack.c.h.b16 %v128
    %v279 = vunpack.c.l.b16 %v129
    %v280 = vunpack.c.h.b16 %v129
    %v281 = vunpack.c.l.b16 %v130
    %v282 = vunpack.c.h.b16 %v130
    %v283 = vunpack.c.l.b16 %v131
    %v284 = vunpack.c.h.b16 %v131
    %v285 = vunpack.c.l.b16 %v132
    %v286 = vunpack.c.h.b16 %v132
    %v287 = vunpack.c.l.b16 %v133
    %v288 = vunpack.c.h.b16 %v133
    %v289 = vunpack.c.l.b16 %v134
    %v290 = vunpack.c.h.b16 %v134
    %v291 = vunpack.c.l.b16 %v135
    %v292 = vunpack.c.h.b16 %v135
    %v293 = vunpack.c.l.b16 %v136
    %v294 = vunpack.c.h.b16 %v136
    %v295 = vunpack.c.l.b16 %v137
    %v296 = vunpack.c.h.b16 %v137
    %v297 = vunpack.c.l.b16 %v138
    %v298 = vunpack.c.h.b16 %v138
    %v299 = vunpack.c.l.b16 %v139
    %v300 = vunpack.c.h.b16 %v139
    %v301 = vunpack.c.l.b16 %v140
    %v302 = vunpack.c.h.b16 %v140
    %v303 = vunpack.c.l.b16 %v141
    %v304 = vunpack.c.h.b16 %v141
    %v305 = vunpack.c.l.b16 %v142
    %v306 = vunpack.c.h.b16 %v142
    %v307 = vunpack.c.l.b16 %v143
    %v308 = vunpack.c.h.b16 %v143
    %v309 = vunpack.c.l.b16 %v144
    %v310 = vunpack.c.h.b16 %v144
    %v311 = vunpack.c.l.b16 %v145
    %v312 = vunpack.c.h.b16 %v145
    %v313 = vunpack.c.l.b16 %v146
    %v314 = vunpack.c.h.b16 %v146
    %v315 = vunpack.c.l.b16 %v147
    %v316 = vunpack.c.h.b16 %v147
    %v317 = vunpack.c.l.b16 %v148
    %v318 = vunpack.c.h.b16 %v148
    %v319 = vunpack.c.l.b16 %v149
    %v320 = vunpack.c.h.b16 %v149
    %v321 = vunpack.c.l.b16 %v150
    %v322 = vunpack.c.h.b16 %v150
    %v323 = vunpack.c.l.b16 %v151
    %v324 = vunpack.c.h.b16 %v151
    %v325 = vunpack.c.l.b16 %v152
    %v326 = vunpack.c.h.b16 %v152
    %v327 = vunpack.c.l.b16 %v153
    %v328 = vunpack.c.h.b16 %v153
    %v329 = vunpack.c.l.b16 %v154
    %v330 = vunpack.c.h.b16 %v154
    %v331 = vunpack.c.l.b16 %v155
    %v332 = vunpack.c.h.b16 %v155
    %v333 = vunpack.c.l.b16 %v156
    %v334 = vunpack.c.h.b16 %v156
    %v335 = vunpack.c.l.b16 %v157
    %v336 = vunpack.c.h.b16 %v157
    %v337 = vunpack.c.l.b16 %v158
    %v338 = vunpack.c.h.b16 %v158
    %v339 = vunpack.c.l.b16 %v159
    %v340 = vunpack.c.h.b16 %v159
    %v341 = vunpack.c.l.b16 %v160
    %v342 = vunpack.c.h.b16 %v160
    %v343 = vunpack.c.l.b16 %v161
    %v344 = vunpack.c.h.b16 %v161
    %v345 = vunpack.c.l.b16 %v162
    %v346 = vunpack.c.h.b16 %v162
    %v347 = vunpack.c.l.b16 %v163
    %v348 = vunpack.c.h.b16 %v163
    %v349 = vunpack.c.l.b16 %v164
    %v350 = vunpack.c.h.b16 %v164
    %v351 = vunpack.c.l.b16 %v165
    %v352 = vunpack.c.h.b16 %v165
    %v353 = vunpack.c.l.b16 %v166
    %v354 = vunpack.c.h.b16 %v166
    %v355 = vunpack.c.l.b16 %v167
    %v356 = vunpack.c.h.b16 %v167
    %v357 = vunpack.c.l.b16 %v168
    %v358 = vunpack.c.h.b16 %v168
    %v359 = vunpack.c.l.b16 %v169
    %v360 = vunpack.c.h.b16 %v169
    %v361 = vunpack.c.l.b16 %v170
    %v362 = vunpack.c.h.b16 %v170
    %v363 = vpack.c.b16 %v239, %v235
    %v364 = vpack.c.b16 %v240, %v236
    %v365 = vpack.c.b16 %v241, %v237
    %v366 = vpack.c.b16 %v242, %v238
    %v367 = vpack.c.b16 %v247, %v243
    %v368 = vpack.c.b16 %v248, %v244
    %v369 = vpack.c.b16 %v249, %v245
    %v370 = vpack.c.b16 %v250, %v246
    %v371 = vpack.c.b16 %v255, %v251
    %v372 = vpack.c.b16 %v256, %v252
    %v373 = vpack.c.b16 %v257, %v253
    %v374 = vpack.c.b16 %v258, %v254
    %v375 = vpack.c.b16 %v263, %v259
    %v376 = vpack.c.b16 %v264, %v260
    %v377 = vpack.c.b16 %v265, %v261
    %v378 = vpack.c.b16 %v266, %v262
    %v379 = vpack.c.b16 %v271, %v267
    %v380 = vpack.c.b16 %v272, %v268
    %v381 = vpack.c.b16 %v273, %v269
    %v382 = vpack.c.b16 %v274, %v270
    %v383 = vpack.c.b16 %v279, %v275
    %v384 = vpack.c.b16 %v280, %v276
    %v385 = vpack.c.b16 %v281, %v277
    %v386 = vpack.c.b16 %v282, %v278
    %v387 = vpack.c.b16 %v287, %v283
    %v388 = vpack.c.b16 %v288, %v284
    %v389 = vpack.c.b16 %v289, %v285
    %v390 = vpack.c.b16 %v290, %v286
    %v391 = vpack.c.b16 %v295, %v291
    %v392 = vpack.c.b16 %v296, %v292
    %v393 = vpack.c.b16 %v297, %v293
    %v394 = vpack.c.b16 %v298, %v294
    %v395 = vpack.c.b16 %v303, %v299
    %v396 = vpack.c.b16 %v304, %v300
    %v397 = vpack.c.b16 %v305, %v301
    %v398 = vpack.c.b16 %v306, %v302
    %v399 = vpack.c.b16 %v311, %v307
    %v400 = vpack.c.b16 %v312, %v308
    %v401 = vpack.c.b16 %v313, %v309
    %v402 = vpack.c.b16 %v314, %v310
    %v403 = vpack.c.b16 %v319, %v315
    %v404 = vpack.c.b16 %v320, %v316
    %v405 = vpack.c.b16 %v321, %v317
    %v406 = vpack.c.b16 %v322, %v318
    %v407 = vpack.c.b16 %v327, %v323
    %v408 = vpack.c.b16 %v328, %v324
    %v409 = vpack.c.b16 %v329, %v325
    %v410 = vpack.c.b16 %v330, %v326
    %v411 = vpack.c.b16 %v335, %v331
    %v412 = vpack.c.b16 %v336, %v332
    %v413 = vpack.c.b16 %v337, %v333
    %v414 = vpack.c.b16 %v338, %v334
    %v415 = vpack.c.b16 %v343, %v339
    %v416 = vpack.c.b16 %v344, %v340
    %v417 = vpack.c.b16 %v345, %v341
    %v418 = vpack.c.b16 %v346, %v342
    %v419 = vpack.c.b16 %v351, %v347
    %v420 = vpack.c.b16 %v352, %v348
    %v421 = vpack.c.b16 %v353, %v349
    %v422 = vpack.c.b16 %v354, %v350
    %v423 = vpack.c.b16 %v359, %v355
    %v424 = vpack.c.b16 %v360, %v356
    %v425 = vpack.c.b16 %v361, %v357
    %v426 = vpack.c.b16 %v362, %v358
    %491 = vmatprep.subr.bf16.mxu0 %v364
    %492 = vmatpush1.bf16.msra.mxu0 %v363
    %493 = vmatprep.subr.bf16.mxu0 %v368
    %494 = vmatpush1.bf16.msra.mxu0 %v367
    %495 = vmatprep.subr.bf16.mxu0 %v372
    %496 = vmatpush1.bf16.msra.mxu0 %v371
    %497 = vmatprep.subr.bf16.mxu0 %v376
    %498 = vmatpush1.bf16.msra.mxu0 %v375
    %499 = vmatprep.subr.bf16.mxu0 %v380
    %500 = vmatpush1.bf16.msra.mxu0 %v379
    %501 = vmatprep.subr.bf16.mxu0 %v384
    %502 = vmatpush1.bf16.msra.mxu0 %v383
    %503 = vmatprep.subr.bf16.mxu0 %v388
    %504 = vmatpush1.bf16.msra.mxu0 %v387
    %505 = vmatprep.subr.bf16.mxu0 %v392
    %506 = vmatpush1.bf16.msra.mxu0 %v391
    %507 = vmatprep.subr.bf16.mxu0 %v396
    %508 = vmatpush1.bf16.msra.mxu0 %v395
    %509 = vmatprep.subr.bf16.mxu0 %v400
    %510 = vmatpush1.bf16.msra.mxu0 %v399
    %511 = vmatprep.subr.bf16.mxu0 %v404
    %512 = vmatpush1.bf16.msra.mxu0 %v403
    %513 = vmatprep.subr.bf16.mxu0 %v408
    %514 = vmatpush1.bf16.msra.mxu0 %v407
    %515 = vmatprep.subr.bf16.mxu0 %v412
    %516 = vmatpush1.bf16.msra.mxu0 %v411
    %517 = vmatprep.subr.bf16.mxu0 %v416
    %518 = vmatpush1.bf16.msra.mxu0 %v415
    %519 = vmatprep.subr.bf16.mxu0 %v420
    %520 = vmatpush1.bf16.msra.mxu0 %v419
    %521 = vmatprep.subr.bf16.mxu0 %v424
    %522 = vmatpush1.bf16.msra.mxu0 %v423
    %523 = vmatprep.mubr.bf16.mxu0 %v106
    %524 = vmatmul.mubr.bf16.gmra.mrb[0].mxu0 %v105
    %v525 = vpop.f32.mrb[0].mxu0
    %v526 = vadd.f32 0.0, %v525
    %v527 = vpop.f32.mrb[0].mxu0
    %v528 = vadd.f32 0.0, %v527
    %v529 = vpop.f32.mrb[0].mxu0
    %v530 = vpop.f32.mrb[0].mxu0
    %531 = vdwg.mxu0
    %532 = vmatprep.subr.bf16.mxu0 %v366
    %533 = vmatpush1.bf16.msra.mxu0 %v365
    %534 = vmatprep.subr.bf16.mxu0 %v370
    %535 = vmatpush1.bf16.msra.mxu0 %v369
    %536 = vmatprep.subr.bf16.mxu0 %v374
    %537 = vmatpush1.bf16.msra.mxu0 %v373
    %538 = vmatprep.subr.bf16.mxu0 %v378
    %539 = vmatpush1.bf16.msra.mxu0 %v377
    %540 = vmatprep.subr.bf16.mxu0 %v382
    %541 = vmatpush1.bf16.msra.mxu0 %v381
    %542 = vmatprep.subr.bf16.mxu0 %v386
    %543 = vmatpush1.bf16.msra.mxu0 %v385
    %544 = vmatprep.subr.bf16.mxu0 %v390
    %545 = vmatpush1.bf16.msra.mxu0 %v389
    %546 = vmatprep.subr.bf16.mxu0 %v394
    %547 = vmatpush1.bf16.msra.mxu0 %v393
    %548 = vmatprep.subr.bf16.mxu0 %v398
    %549 = vmatpush1.bf16.msra.mxu0 %v397
    %550 = vmatprep.subr.bf16.mxu0 %v402
    %551 = vmatpush1.bf16.msra.mxu0 %v401
    %552 = vmatprep.subr.bf16.mxu0 %v406
    %553 = vmatpush1.bf16.msra.mxu0 %v405
    %554 = vmatprep.subr.bf16.mxu0 %v410
    %555 = vmatpush1.bf16.msra.mxu0 %v409
    %556 = vmatprep.subr.bf16.mxu0 %v414
    %557 = vmatpush1.bf16.msra.mxu0 %v413
    %558 = vmatprep.subr.bf16.mxu0 %v418
    %559 = vmatpush1.bf16.msra.mxu0 %v417
    %560 = vmatprep.subr.bf16.mxu0 %v422
    %561 = vmatpush1.bf16.msra.mxu0 %v421
    %562 = vmatprep.subr.bf16.mxu0 %v426
    %563 = vmatpush1.bf16.msra.mxu0 %v425
    %564 = vmatprep.mubr.bf16.mxu0 %v106
    %565 = vmatmul.mubr.bf16.gmra.mrb[0].mxu0 %v105
    %v566 = vpop.f32.mrb[0].mxu0
    %v567 = vadd.f32 0.0, %v566
    %v568 = vpop.f32.mrb[0].mxu0
    %v569 = vadd.f32 0.0, %v568
    %v570 = vpop.f32.mrb[0].mxu0
    %v571 = vpop.f32.mrb[0].mxu0
    %572 = vdwg.mxu0
    %v573 = vld [vmem:[#allocation11] ss:$8 sm:$0xf]
    %s574 = scalar_lea.vmem [#allocation11], 1
    %v575 = vld [vmem:[%s574] ss:$8 sm:$0xf]
    %v576 = vrot.slane %v526, 4
    %v577 = vadd.f32 %v526, %v576
    %v578 = vrot.slane %v577, 2
    %v579 = vadd.f32 %v577, %v578
    %v580 = vrot.slane %v579, 1
    %v581 = vadd.f32 %v579, %v580
    %v582 = vrot.slane %v528, 4
    %v583 = vadd.f32 %v528, %v582
    %v584 = vrot.slane %v583, 2
    %v585 = vadd.f32 %v583, %v584
    %v586 = vrot.slane %v585, 1
    %v587 = vadd.f32 %v585, %v586
    %v588 = vrot.slane %v567, 4
    %v589 = vadd.f32 %v567, %v588
    %v590 = vrot.slane %v589, 2
    %v591 = vadd.f32 %v589, %v590
    %v592 = vrot.slane %v591, 1
    %v593 = vadd.f32 %v591, %v592
    %v594 = vrot.slane %v569, 4
    %v595 = vadd.f32 %v569, %v594
    %v596 = vrot.slane %v595, 2
    %v597 = vadd.f32 %v595, %v596
    %v598 = vrot.slane %v597, 1
    %v599 = vadd.f32 %v597, %v598
    %v600 = vmul.f32 %v526, %v526
    %v601 = vmul.f32 %v528, %v528
    %v602 = vmul.f32 %v567, %v567
    %v603 = vmul.f32 %v569, %v569
    %v604 = vrot.slane %v600, 4
    %v605 = vadd.f32 %v600, %v604
    %v606 = vrot.slane %v605, 2
    %v607 = vadd.f32 %v605, %v606
    %v608 = vrot.slane %v607, 1
    %v609 = vadd.f32 %v607, %v608
    %v610 = vrot.slane %v601, 4
    %v611 = vadd.f32 %v601, %v610
    %v612 = vrot.slane %v611, 2
    %v613 = vadd.f32 %v611, %v612
    %v614 = vrot.slane %v613, 1
    %v615 = vadd.f32 %v613, %v614
    %v616 = vrot.slane %v602, 4
    %v617 = vadd.f32 %v602, %v616
    %v618 = vrot.slane %v617, 2
    %v619 = vadd.f32 %v617, %v618
    %v620 = vrot.slane %v619, 1
    %v621 = vadd.f32 %v619, %v620
    %v622 = vrot.slane %v603, 4
    %v623 = vadd.f32 %v603, %v622
    %v624 = vrot.slane %v623, 2
    %v625 = vadd.f32 %v623, %v624
    %v626 = vrot.slane %v625, 1
    %v627 = vadd.f32 %v625, %v626
    %v628 = vmul.f32 %v581, 0.125
    %v629 = vmul.f32 %v587, 0.125
    %v630 = vmul.f32 %v593, 0.125
    %v631 = vmul.f32 %v599, 0.125
    %v632 = vmul.f32 %v609, 0.125
    %v633 = vmul.f32 %v615, 0.125
    %v634 = vmul.f32 %v621, 0.125
    %v635 = vmul.f32 %v627, 0.125
    %v636 = vmul.f32 %v628, %v628
    %v637 = vmul.f32 %v629, %v629
    %v638 = vmul.f32 %v630, %v630
    %v639 = vmul.f32 %v631, %v631
    %v640 = vsub.f32 %v632, %v636
    %v641 = vsub.f32 %v633, %v637
    %v642 = vsub.f32 %v634, %v638
    %v643 = vsub.f32 %v635, %v639
    %v644 = vmax.f32 %v640, 0.0
    %v645 = vmax.f32 %v641, 0.0
    %v646 = vmax.f32 %v642, 0.0
    %v647 = vmax.f32 %v643, 0.0
    %v648 = vadd.f32 %v644, 1e-05
    %v649 = vadd.f32 %v645, 1e-05
    %v650 = vadd.f32 %v646, 1e-05
    %v651 = vadd.f32 %v647, 1e-05
    %v652 = vrsqrt.pop %v648
    %v653 = vrsqrt.pop %v649
    %v654 = vrsqrt.pop %v650
    %v655 = vrsqrt.pop %v651
    %v660 = vcombine.low %v652, %v653
    %v661 = vcombine.low %v654, %v655
    %v663 = vunpack.c.l.s4 1966171168
    %v664 = vunpack.c.0.s8 %v663
    %v665 = vlaneseq
    %v666 = vshrl.u32 %v665, 7
    %v667 = vsub.s32 %v664, %v666
    %v668 = vrot.slane %v660, %v667
    %v670 = vunpack.c.l.s4 1966171168
    %v671 = vunpack.c.0.s8 %v670
    %v672 = vlaneseq
    %v673 = vshrl.u32 %v672, 7
    %v674 = vsub.s32 %v671, %v673
    %v675 = vrot.slane %v661, %v674
    %v676 = vcombine.low %v668, %v675
    %v678 = vunpack.c.l.s4 1966171168
    %v679 = vunpack.c.0.s8 %v678
    %v680 = vlaneseq
    %v681 = vshrl.u32 %v680, 7
    %v682 = vsub.s32 %v679, %v681
    %v683 = vrot.slane %v676, %v682
    %v685 = vmul.f32 %v573, %v683
    %v687 = vlaneseq
    %v688 = vshrl.u32 %v687, 7
    %v689 = vsub.s32 0, %v688
    %v690 = vrot.slane %v685, %v689
    %v691 = vlaneseq
    %v692 = vshrl.u32 %v691, 7
    %v693 = vsub.s32 1, %v692
    %v694 = vrot.slane %v685, %v693
    %v695 = vlaneseq
    %v696 = vshrl.u32 %v695, 7
    %v697 = vsub.s32 2, %v696
    %v698 = vrot.slane %v685, %v697
    %v699 = vlaneseq
    %v700 = vshrl.u32 %v699, 7
    %v701 = vsub.s32 3, %v700
    %v702 = vrot.slane %v685, %v701
    %v707 = vmul.f32 %v628, %v690
    %v708 = vmul.f32 %v629, %v694
    %v709 = vmul.f32 %v630, %v698
    %v710 = vmul.f32 %v631, %v702
    %v715 = vcombine.low %v707, %v708
    %v716 = vcombine.low %v709, %v710
    %v718 = vunpack.c.l.s4 1966171168
    %v719 = vunpack.c.0.s8 %v718
    %v720 = vlaneseq
    %v721 = vshrl.u32 %v720, 7
    %v722 = vsub.s32 %v719, %v721
    %v723 = vrot.slane %v715, %v722
    %v725 = vunpack.c.l.s4 1966171168
    %v726 = vunpack.c.0.s8 %v725
    %v727 = vlaneseq
    %v728 = vshrl.u32 %v727, 7
    %v729 = vsub.s32 %v726, %v728
    %v730 = vrot.slane %v716, %v729
    %v731 = vcombine.low %v723, %v730
    %v733 = vunpack.c.l.s4 1966171168
    %v734 = vunpack.c.0.s8 %v733
    %v735 = vlaneseq
    %v736 = vshrl.u32 %v735, 7
    %v737 = vsub.s32 %v734, %v736
    %v738 = vrot.slane %v731, %v737
    %v740 = vsub.f32 %v575, %v738
    %v741 = vmul.f32 %v526, %v690
    %v742 = vmul.f32 %v528, %v694
    %v743 = vmul.f32 %v567, %v698
    %v744 = vmul.f32 %v569, %v702
    %v746 = vlaneseq
    %v747 = vshrl.u32 %v746, 7
    %v748 = vsub.s32 0, %v747
    %v749 = vrot.slane %v740, %v748
    %v750 = vlaneseq
    %v751 = vshrl.u32 %v750, 7
    %v752 = vsub.s32 1, %v751
    %v753 = vrot.slane %v740, %v752
    %v754 = vlaneseq
    %v755 = vshrl.u32 %v754, 7
    %v756 = vsub.s32 2, %v755
    %v757 = vrot.slane %v740, %v756
    %v758 = vlaneseq
    %v759 = vshrl.u32 %v758, 7
    %v760 = vsub.s32 3, %v759
    %v761 = vrot.slane %v740, %v760
    %v766 = vadd.f32 %v741, %v749
    %v767 = vadd.f32 %v742, %v753
    %v768 = vadd.f32 %v743, %v757
    %v769 = vadd.f32 %v744, %v761
    %v770 = vmax.f32 %v766, 0.0
    %v771 = vmax.f32 %v767, 0.0
    %v772 = vmax.f32 %v768, 0.0
    %v773 = vmax.f32 %v769, 0.0
    %v774 = vpack.c.bf16 %v770, %v770
    %v775 = vpack.c.bf16 %v771, %v771
    %v776 = vpack.c.bf16 %v772, %v772
    %v777 = vpack.c.bf16 %v773, %v773
    %v778 = vld [vmem:[#allocation7] sm:$0xff]
    %v779 = vld [vmem:[#allocation7 + $0x8] sm:$0xff]
    %v780 = vld [vmem:[#allocation7 + $0x10] sm:$0xff]
    %v781 = vld [vmem:[#allocation7 + $0x18] sm:$0xff]
    %v782 = vld [vmem:[#allocation7 + $0x20] sm:$0xff]
    %v783 = vld [vmem:[#allocation7 + $0x28] sm:$0xff]
    %v784 = vld [vmem:[#allocation7 + $0x30] sm:$0xff]
    %v785 = vld [vmem:[#allocation7 + $0x38] sm:$0xff]
    %v786 = vld [vmem:[#allocation7 + $0x40] sm:$0xff]
    %v787 = vld [vmem:[#allocation7 + $0x48] sm:$0xff]
    %v788 = vld [vmem:[#allocation7 + $0x50] sm:$0xff]
    %v789 = vld [vmem:[#allocation7 + $0x58] sm:$0xff]
    %v790 = vld [vmem:[#allocation7 + $0x60] sm:$0xff]
    %v791 = vld [vmem:[#allocation7 + $0x68] sm:$0xff]
    %v792 = vld [vmem:[#allocation7 + $0x70] sm:$0xff]
    %v793 = vld [vmem:[#allocation7 + $0x78] sm:$0xff]
    %v794 = vld [vmem:[#allocation7 + $0x80] sm:$0xff]
    %v795 = vld [vmem:[#allocation7 + $0x88] sm:$0xff]
    %v796 = vld [vmem:[#allocation7 + $0x90] sm:$0xff]
    %v797 = vld [vmem:[#allocation7 + $0x98] sm:$0xff]
    %v798 = vld [vmem:[#allocation7 + $0xa0] sm:$0xff]
    %v799 = vld [vmem:[#allocation7 + $0xa8] sm:$0xff]
    %v800 = vld [vmem:[#allocation7 + $0xb0] sm:$0xff]
    %v801 = vld [vmem:[#allocation7 + $0xb8] sm:$0xff]
    %v802 = vld [vmem:[#allocation7 + $0xc0] sm:$0xff]
    %v803 = vld [vmem:[#allocation7 + $0xc8] sm:$0xff]
    %v804 = vld [vmem:[#allocation7 + $0xd0] sm:$0xff]
    %v805 = vld [vmem:[#allocation7 + $0xd8] sm:$0xff]
    %v806 = vld [vmem:[#allocation7 + $0xe0] sm:$0xff]
    %v807 = vld [vmem:[#allocation7 + $0xe8] sm:$0xff]
    %v808 = vld [vmem:[#allocation7 + $0xf0] sm:$0xff]
    %v809 = vld [vmem:[#allocation7 + $0xf8] sm:$0xff]
    %v810 = vld [vmem:[#allocation7 + $0x100] sm:$0xff]
    %v811 = vld [vmem:[#allocation7 + $0x108] sm:$0xff]
    %v812 = vld [vmem:[#allocation7 + $0x110] sm:$0xff]
    %v813 = vld [vmem:[#allocation7 + $0x118] sm:$0xff]
    %v814 = vld [vmem:[#allocation7 + $0x120] sm:$0xff]
    %v815 = vld [vmem:[#allocation7 + $0x128] sm:$0xff]
    %v816 = vld [vmem:[#allocation7 + $0x130] sm:$0xff]
    %v817 = vld [vmem:[#allocation7 + $0x138] sm:$0xff]
    %v818 = vld [vmem:[#allocation7 + $0x140] sm:$0xff]
    %v819 = vld [vmem:[#allocation7 + $0x148] sm:$0xff]
    %v820 = vld [vmem:[#allocation7 + $0x150] sm:$0xff]
    %v821 = vld [vmem:[#allocation7 + $0x158] sm:$0xff]
    %v822 = vld [vmem:[#allocation7 + $0x160] sm:$0xff]
    %v823 = vld [vmem:[#allocation7 + $0x168] sm:$0xff]
    %v824 = vld [vmem:[#allocation7 + $0x170] sm:$0xff]
    %v825 = vld [vmem:[#allocation7 + $0x178] sm:$0xff]
    %v826 = vld [vmem:[#allocation7 + $0x180] sm:$0xff]
    %v827 = vld [vmem:[#allocation7 + $0x188] sm:$0xff]
    %v828 = vld [vmem:[#allocation7 + $0x190] sm:$0xff]
    %v829 = vld [vmem:[#allocation7 + $0x198] sm:$0xff]
    %v830 = vld [vmem:[#allocation7 + $0x1a0] sm:$0xff]
    %v831 = vld [vmem:[#allocation7 + $0x1a8] sm:$0xff]
    %v832 = vld [vmem:[#allocation7 + $0x1b0] sm:$0xff]
    %v833 = vld [vmem:[#allocation7 + $0x1b8] sm:$0xff]
    %v834 = vld [vmem:[#allocation7 + $0x1c0] sm:$0xff]
    %v835 = vld [vmem:[#allocation7 + $0x1c8] sm:$0xff]
    %v836 = vld [vmem:[#allocation7 + $0x1d0] sm:$0xff]
    %v837 = vld [vmem:[#allocation7 + $0x1d8] sm:$0xff]
    %v838 = vld [vmem:[#allocation7 + $0x1e0] sm:$0xff]
    %v839 = vld [vmem:[#allocation7 + $0x1e8] sm:$0xff]
    %v840 = vld [vmem:[#allocation7 + $0x1f0] sm:$0xff]
    %v841 = vld [vmem:[#allocation7 + $0x1f8] sm:$0xff]
    %v906 = vunpack.c.l.b16 %v778
    %v907 = vunpack.c.h.b16 %v778
    %v908 = vunpack.c.l.b16 %v779
    %v909 = vunpack.c.h.b16 %v779
    %v910 = vunpack.c.l.b16 %v780
    %v911 = vunpack.c.h.b16 %v780
    %v912 = vunpack.c.l.b16 %v781
    %v913 = vunpack.c.h.b16 %v781
    %v914 = vunpack.c.l.b16 %v782
    %v915 = vunpack.c.h.b16 %v782
    %v916 = vunpack.c.l.b16 %v783
    %v917 = vunpack.c.h.b16 %v783
    %v918 = vunpack.c.l.b16 %v784
    %v919 = vunpack.c.h.b16 %v784
    %v920 = vunpack.c.l.b16 %v785
    %v921 = vunpack.c.h.b16 %v785
    %v922 = vunpack.c.l.b16 %v786
    %v923 = vunpack.c.h.b16 %v786
    %v924 = vunpack.c.l.b16 %v787
    %v925 = vunpack.c.h.b16 %v787
    %v926 = vunpack.c.l.b16 %v788
    %v927 = vunpack.c.h.b16 %v788
    %v928 = vunpack.c.l.b16 %v789
    %v929 = vunpack.c.h.b16 %v789
    %v930 = vunpack.c.l.b16 %v790
    %v931 = vunpack.c.h.b16 %v790
    %v932 = vunpack.c.l.b16 %v791
    %v933 = vunpack.c.h.b16 %v791
    %v934 = vunpack.c.l.b16 %v792
    %v935 = vunpack.c.h.b16 %v792
    %v936 = vunpack.c.l.b16 %v793
    %v937 = vunpack.c.h.b16 %v793
    %v938 = vunpack.c.l.b16 %v794
    %v939 = vunpack.c.h.b16 %v794
    %v940 = vunpack.c.l.b16 %v795
    %v941 = vunpack.c.h.b16 %v795
    %v942 = vunpack.c.l.b16 %v796
    %v943 = vunpack.c.h.b16 %v796
    %v944 = vunpack.c.l.b16 %v797
    %v945 = vunpack.c.h.b16 %v797
    %v946 = vunpack.c.l.b16 %v798
    %v947 = vunpack.c.h.b16 %v798
    %v948 = vunpack.c.l.b16 %v799
    %v949 = vunpack.c.h.b16 %v799
    %v950 = vunpack.c.l.b16 %v800
    %v951 = vunpack.c.h.b16 %v800
    %v952 = vunpack.c.l.b16 %v801
    %v953 = vunpack.c.h.b16 %v801
    %v954 = vunpack.c.l.b16 %v802
    %v955 = vunpack.c.h.b16 %v802
    %v956 = vunpack.c.l.b16 %v803
    %v957 = vunpack.c.h.b16 %v803
    %v958 = vunpack.c.l.b16 %v804
    %v959 = vunpack.c.h.b16 %v804
    %v960 = vunpack.c.l.b16 %v805
    %v961 = vunpack.c.h.b16 %v805
    %v962 = vunpack.c.l.b16 %v806
    %v963 = vunpack.c.h.b16 %v806
    %v964 = vunpack.c.l.b16 %v807
    %v965 = vunpack.c.h.b16 %v807
    %v966 = vunpack.c.l.b16 %v808
    %v967 = vunpack.c.h.b16 %v808
    %v968 = vunpack.c.l.b16 %v809
    %v969 = vunpack.c.h.b16 %v809
    %v970 = vunpack.c.l.b16 %v810
    %v971 = vunpack.c.h.b16 %v810
    %v972 = vunpack.c.l.b16 %v811
    %v973 = vunpack.c.h.b16 %v811
    %v974 = vunpack.c.l.b16 %v812
    %v975 = vunpack.c.h.b16 %v812
    %v976 = vunpack.c.l.b16 %v813
    %v977 = vunpack.c.h.b16 %v813
    %v978 = vunpack.c.l.b16 %v814
    %v979 = vunpack.c.h.b16 %v814
    %v980 = vunpack.c.l.b16 %v815
    %v981 = vunpack.c.h.b16 %v815
    %v982 = vunpack.c.l.b16 %v816
    %v983 = vunpack.c.h.b16 %v816
    %v984 = vunpack.c.l.b16 %v817
    %v985 = vunpack.c.h.b16 %v817
    %v986 = vunpack.c.l.b16 %v818
    %v987 = vunpack.c.h.b16 %v818
    %v988 = vunpack.c.l.b16 %v819
    %v989 = vunpack.c.h.b16 %v819
    %v990 = vunpack.c.l.b16 %v820
    %v991 = vunpack.c.h.b16 %v820
    %v992 = vunpack.c.l.b16 %v821
    %v993 = vunpack.c.h.b16 %v821
    %v994 = vunpack.c.l.b16 %v822
    %v995 = vunpack.c.h.b16 %v822
    %v996 = vunpack.c.l.b16 %v823
    %v997 = vunpack.c.h.b16 %v823
    %v998 = vunpack.c.l.b16 %v824
    %v999 = vunpack.c.h.b16 %v824
    %v1000 = vunpack.c.l.b16 %v825
    %v1001 = vunpack.c.h.b16 %v825
    %v1002 = vunpack.c.l.b16 %v826
    %v1003 = vunpack.c.h.b16 %v826
    %v1004 = vunpack.c.l.b16 %v827
    %v1005 = vunpack.c.h.b16 %v827
    %v1006 = vunpack.c.l.b16 %v828
    %v1007 = vunpack.c.h.b16 %v828
    %v1008 = vunpack.c.l.b16 %v829
    %v1009 = vunpack.c.h.b16 %v829
    %v1010 = vunpack.c.l.b16 %v830
    %v1011 = vunpack.c.h.b16 %v830
    %v1012 = vunpack.c.l.b16 %v831
    %v1013 = vunpack.c.h.b16 %v831
    %v1014 = vunpack.c.l.b16 %v832
    %v1015 = vunpack.c.h.b16 %v832
    %v1016 = vunpack.c.l.b16 %v833
    %v1017 = vunpack.c.h.b16 %v833
    %v1018 = vunpack.c.l.b16 %v834
    %v1019 = vunpack.c.h.b16 %v834
    %v1020 = vunpack.c.l.b16 %v835
    %v1021 = vunpack.c.h.b16 %v835
    %v1022 = vunpack.c.l.b16 %v836
    %v1023 = vunpack.c.h.b16 %v836
    %v1024 = vunpack.c.l.b16 %v837
    %v1025 = vunpack.c.h.b16 %v837
    %v1026 = vunpack.c.l.b16 %v838
    %v1027 = vunpack.c.h.b16 %v838
    %v1028 = vunpack.c.l.b16 %v839
    %v1029 = vunpack.c.h.b16 %v839
    %v1030 = vunpack.c.l.b16 %v840
    %v1031 = vunpack.c.h.b16 %v840
    %v1032 = vunpack.c.l.b16 %v841
    %v1033 = vunpack.c.h.b16 %v841
    %v1034 = vpack.c.b16 %v908, %v906
    %v1035 = vpack.c.b16 %v909, %v907
    %v1036 = vpack.c.b16 %v912, %v910
    %v1037 = vpack.c.b16 %v913, %v911
    %v1038 = vpack.c.b16 %v916, %v914
    %v1039 = vpack.c.b16 %v917, %v915
    %v1040 = vpack.c.b16 %v920, %v918
    %v1041 = vpack.c.b16 %v921, %v919
    %v1042 = vpack.c.b16 %v924, %v922
    %v1043 = vpack.c.b16 %v925, %v923
    %v1044 = vpack.c.b16 %v928, %v926
    %v1045 = vpack.c.b16 %v929, %v927
    %v1046 = vpack.c.b16 %v932, %v930
    %v1047 = vpack.c.b16 %v933, %v931
    %v1048 = vpack.c.b16 %v936, %v934
    %v1049 = vpack.c.b16 %v937, %v935
    %v1050 = vpack.c.b16 %v940, %v938
    %v1051 = vpack.c.b16 %v941, %v939
    %v1052 = vpack.c.b16 %v944, %v942
    %v1053 = vpack.c.b16 %v945, %v943
    %v1054 = vpack.c.b16 %v948, %v946
    %v1055 = vpack.c.b16 %v949, %v947
    %v1056 = vpack.c.b16 %v952, %v950
    %v1057 = vpack.c.b16 %v953, %v951
    %v1058 = vpack.c.b16 %v956, %v954
    %v1059 = vpack.c.b16 %v957, %v955
    %v1060 = vpack.c.b16 %v960, %v958
    %v1061 = vpack.c.b16 %v961, %v959
    %v1062 = vpack.c.b16 %v964, %v962
    %v1063 = vpack.c.b16 %v965, %v963
    %v1064 = vpack.c.b16 %v968, %v966
    %v1065 = vpack.c.b16 %v969, %v967
    %v1066 = vpack.c.b16 %v972, %v970
    %v1067 = vpack.c.b16 %v973, %v971
    %v1068 = vpack.c.b16 %v976, %v974
    %v1069 = vpack.c.b16 %v977, %v975
    %v1070 = vpack.c.b16 %v980, %v978
    %v1071 = vpack.c.b16 %v981, %v979
    %v1072 = vpack.c.b16 %v984, %v982
    %v1073 = vpack.c.b16 %v985, %v983
    %v1074 = vpack.c.b16 %v988, %v986
    %v1075 = vpack.c.b16 %v989, %v987
    %v1076 = vpack.c.b16 %v992, %v990
    %v1077 = vpack.c.b16 %v993, %v991
    %v1078 = vpack.c.b16 %v996, %v994
    %v1079 = vpack.c.b16 %v997, %v995
    %v1080 = vpack.c.b16 %v1000, %v998
    %v1081 = vpack.c.b16 %v1001, %v999
    %v1082 = vpack.c.b16 %v1004, %v1002
    %v1083 = vpack.c.b16 %v1005, %v1003
    %v1084 = vpack.c.b16 %v1008, %v1006
    %v1085 = vpack.c.b16 %v1009, %v1007
    %v1086 = vpack.c.b16 %v1012, %v1010
    %v1087 = vpack.c.b16 %v1013, %v1011
    %v1088 = vpack.c.b16 %v1016, %v1014
    %v1089 = vpack.c.b16 %v1017, %v1015
    %v1090 = vpack.c.b16 %v1020, %v1018
    %v1091 = vpack.c.b16 %v1021, %v1019
    %v1092 = vpack.c.b16 %v1024, %v1022
    %v1093 = vpack.c.b16 %v1025, %v1023
    %v1094 = vpack.c.b16 %v1028, %v1026
    %v1095 = vpack.c.b16 %v1029, %v1027
    %v1096 = vpack.c.b16 %v1032, %v1030
    %v1097 = vpack.c.b16 %v1033, %v1031
    %1162 = vmatprep.subr.bf16.mxu0 %v1035
    %1163 = vmatpush1.bf16.msra.mxu0 %v1034
    %1164 = vmatprep.subr.bf16.mxu0 %v1037
    %1165 = vmatpush1.bf16.msra.mxu0 %v1036
    %1166 = vmatprep.subr.bf16.mxu0 %v1039
    %1167 = vmatpush1.bf16.msra.mxu0 %v1038
    %1168 = vmatprep.subr.bf16.mxu0 %v1041
    %1169 = vmatpush1.bf16.msra.mxu0 %v1040
    %1170 = vmatprep.subr.bf16.mxu0 %v1043
    %1171 = vmatpush1.bf16.msra.mxu0 %v1042
    %1172 = vmatprep.subr.bf16.mxu0 %v1045
    %1173 = vmatpush1.bf16.msra.mxu0 %v1044
    %1174 = vmatprep.subr.bf16.mxu0 %v1047
    %1175 = vmatpush1.bf16.msra.mxu0 %v1046
    %1176 = vmatprep.subr.bf16.mxu0 %v1049
    %1177 = vmatpush1.bf16.msra.mxu0 %v1048
    %1178 = vmatprep.subr.bf16.mxu0 %v1051
    %1179 = vmatpush1.bf16.msra.mxu0 %v1050
    %1180 = vmatprep.subr.bf16.mxu0 %v1053
    %1181 = vmatpush1.bf16.msra.mxu0 %v1052
    %1182 = vmatprep.subr.bf16.mxu0 %v1055
    %1183 = vmatpush1.bf16.msra.mxu0 %v1054
    %1184 = vmatprep.subr.bf16.mxu0 %v1057
    %1185 = vmatpush1.bf16.msra.mxu0 %v1056
    %1186 = vmatprep.subr.bf16.mxu0 %v1059
    %1187 = vmatpush1.bf16.msra.mxu0 %v1058
    %1188 = vmatprep.subr.bf16.mxu0 %v1061
    %1189 = vmatpush1.bf16.msra.mxu0 %v1060
    %1190 = vmatprep.subr.bf16.mxu0 %v1063
    %1191 = vmatpush1.bf16.msra.mxu0 %v1062
    %1192 = vmatprep.subr.bf16.mxu0 %v1065
    %1193 = vmatpush1.bf16.msra.mxu0 %v1064
    %1194 = vmatprep.mubr.bf16.mxu0 %v775
    %1195 = vmatmul.mubr.bf16.gmra.mrb[0].mxu0 %v774
    %v1196 = vpop.f32.mrb[0].mxu0
    %v1197 = vadd.f32 0.0, %v1196
    %v1198 = vpop.f32.mrb[0].mxu0
    %v1199 = vadd.f32 0.0, %v1198
    %v1200 = vpop.f32.mrb[0].mxu0
    %v1201 = vpop.f32.mrb[0].mxu0
    %1202 = vdwg.mxu0
    %1203 = vmatprep.subr.bf16.mxu0 %v1067
    %1204 = vmatpush1.bf16.msra.mxu0 %v1066
    %1205 = vmatprep.subr.bf16.mxu0 %v1069
    %1206 = vmatpush1.bf16.msra.mxu0 %v1068
    %1207 = vmatprep.subr.bf16.mxu0 %v1071
    %1208 = vmatpush1.bf16.msra.mxu0 %v1070
    %1209 = vmatprep.subr.bf16.mxu0 %v1073
    %1210 = vmatpush1.bf16.msra.mxu0 %v1072
    %1211 = vmatprep.subr.bf16.mxu0 %v1075
    %1212 = vmatpush1.bf16.msra.mxu0 %v1074
    %1213 = vmatprep.subr.bf16.mxu0 %v1077
    %1214 = vmatpush1.bf16.msra.mxu0 %v1076
    %1215 = vmatprep.subr.bf16.mxu0 %v1079
    %1216 = vmatpush1.bf16.msra.mxu0 %v1078
    %1217 = vmatprep.subr.bf16.mxu0 %v1081
    %1218 = vmatpush1.bf16.msra.mxu0 %v1080
    %1219 = vmatprep.subr.bf16.mxu0 %v1083
    %1220 = vmatpush1.bf16.msra.mxu0 %v1082
    %1221 = vmatprep.subr.bf16.mxu0 %v1085
    %1222 = vmatpush1.bf16.msra.mxu0 %v1084
    %1223 = vmatprep.subr.bf16.mxu0 %v1087
    %1224 = vmatpush1.bf16.msra.mxu0 %v1086
    %1225 = vmatprep.subr.bf16.mxu0 %v1089
    %1226 = vmatpush1.bf16.msra.mxu0 %v1088
    %1227 = vmatprep.subr.bf16.mxu0 %v1091
    %1228 = vmatpush1.bf16.msra.mxu0 %v1090
    %1229 = vmatprep.subr.bf16.mxu0 %v1093
    %1230 = vmatpush1.bf16.msra.mxu0 %v1092
    %1231 = vmatprep.subr.bf16.mxu0 %v1095
    %1232 = vmatpush1.bf16.msra.mxu0 %v1094
    %1233 = vmatprep.subr.bf16.mxu0 %v1097
    %1234 = vmatpush1.bf16.msra.mxu0 %v1096
    %1235 = vmatprep.mubr.bf16.mxu0 %v777
    %1236 = vmatmul.mubr.bf16.gmra.mrb[0].mxu0 %v776
    %v1237 = vpop.f32.mrb[0].mxu0
    %v1238 = vadd.f32 %v1197, %v1237
    %v1239 = vpop.f32.mrb[0].mxu0
    %v1240 = vadd.f32 %v1199, %v1239
    %v1241 = vpop.f32.mrb[0].mxu0
    %v1242 = vpop.f32.mrb[0].mxu0
    %1243 = vdwg.mxu0
    %s1244 = scalar_lea.vmem [#allocation11], 2
    %v1245 = vld [vmem:[%s1244] ss:$8 sm:$0x3]
    %s1246 = scalar_lea.vmem [#allocation11], 3
    %v1247 = vld [vmem:[%s1246] ss:$8 sm:$0x3]
    %v1248 = vrot.slane %v1238, 4
    %v1249 = vadd.f32 %v1238, %v1248
    %v1250 = vrot.slane %v1249, 2
    %v1251 = vadd.f32 %v1249, %v1250
    %v1252 = vrot.slane %v1251, 1
    %v1253 = vadd.f32 %v1251, %v1252
    %v1254 = vrot.slane %v1240, 4
    %v1255 = vadd.f32 %v1240, %v1254
    %v1256 = vrot.slane %v1255, 2
    %v1257 = vadd.f32 %v1255, %v1256
    %v1258 = vrot.slane %v1257, 1
    %v1259 = vadd.f32 %v1257, %v1258
    %v1260 = vmul.f32 %v1238, %v1238
    %v1261 = vmul.f32 %v1240, %v1240
    %v1262 = vrot.slane %v1260, 4
    %v1263 = vadd.f32 %v1260, %v1262
    %v1264 = vrot.slane %v1263, 2
    %v1265 = vadd.f32 %v1263, %v1264
    %v1266 = vrot.slane %v1265, 1
    %v1267 = vadd.f32 %v1265, %v1266
    %v1268 = vrot.slane %v1261, 4
    %v1269 = vadd.f32 %v1261, %v1268
    %v1270 = vrot.slane %v1269, 2
    %v1271 = vadd.f32 %v1269, %v1270
    %v1272 = vrot.slane %v1271, 1
    %v1273 = vadd.f32 %v1271, %v1272
    %v1274 = vmul.f32 %v1253, 0.125
    %v1275 = vmul.f32 %v1259, 0.125
    %v1276 = vmul.f32 %v1267, 0.125
    %v1277 = vmul.f32 %v1273, 0.125
    %v1278 = vmul.f32 %v1274, %v1274
    %v1279 = vmul.f32 %v1275, %v1275
    %v1280 = vsub.f32 %v1276, %v1278
    %v1281 = vsub.f32 %v1277, %v1279
    %v1282 = vmax.f32 %v1280, 0.0
    %v1283 = vmax.f32 %v1281, 0.0
    %v1284 = vadd.f32 %v1282, 1e-05
    %v1285 = vadd.f32 %v1283, 1e-05
    %v1286 = vrsqrt.pop %v1284
    %v1287 = vrsqrt.pop %v1285
    %v1290 = vcombine.low %v1286, %v1287
    %v1292 = vunpack.c.l.s4 1966171168
    %v1293 = vunpack.c.0.s8 %v1292
    %v1294 = vlaneseq
    %v1295 = vshrl.u32 %v1294, 7
    %v1296 = vsub.s32 %v1293, %v1295
    %v1297 = vrot.slane %v1290, %v1296
    %v1299 = vunpack.c.l.s4 1966171168
    %v1300 = vunpack.c.0.s8 %v1299
    %v1301 = vlaneseq
    %v1302 = vshrl.u32 %v1301, 7
    %v1303 = vsub.s32 %v1300, %v1302
    %v1304 = vrot.slane %v1297, %v1303
    %v1306 = vmul.f32 %v1245, %v1304
    %v1308 = vlaneseq
    %v1309 = vshrl.u32 %v1308, 7
    %v1310 = vsub.s32 0, %v1309
    %v1311 = vrot.slane %v1306, %v1310
    %v1312 = vlaneseq
    %v1313 = vshrl.u32 %v1312, 7
    %v1314 = vsub.s32 1, %v1313
    %v1315 = vrot.slane %v1306, %v1314
    %v1318 = vmul.f32 %v1274, %v1311
    %v1319 = vmul.f32 %v1275, %v1315
    %v1322 = vcombine.low %v1318, %v1319
    %v1324 = vunpack.c.l.s4 1966171168
    %v1325 = vunpack.c.0.s8 %v1324
    %v1326 = vlaneseq
    %v1327 = vshrl.u32 %v1326, 7
    %v1328 = vsub.s32 %v1325, %v1327
    %v1329 = vrot.slane %v1322, %v1328
    %v1331 = vunpack.c.l.s4 1966171168
    %v1332 = vunpack.c.0.s8 %v1331
    %v1333 = vlaneseq
    %v1334 = vshrl.u32 %v1333, 7
    %v1335 = vsub.s32 %v1332, %v1334
    %v1336 = vrot.slane %v1329, %v1335
    %v1338 = vsub.f32 %v1247, %v1336
    %v1339 = vmul.f32 %v1238, %v1311
    %v1340 = vmul.f32 %v1240, %v1315
    %v1342 = vlaneseq
    %v1343 = vshrl.u32 %v1342, 7
    %v1344 = vsub.s32 0, %v1343
    %v1345 = vrot.slane %v1338, %v1344
    %v1346 = vlaneseq
    %v1347 = vshrl.u32 %v1346, 7
    %v1348 = vsub.s32 1, %v1347
    %v1349 = vrot.slane %v1338, %v1348
    %v1352 = vadd.f32 %v1339, %v1345
    %v1353 = vadd.f32 %v1340, %v1349
    %v1354 = vmax.f32 %v1352, 0.0
    %v1355 = vmax.f32 %v1353, 0.0
    %v1356 = vpack.c.bf16 %v1354, %v1354
    %v1357 = vpack.c.bf16 %v1355, %v1355
    %v1358 = vld [vmem:[#allocation8] sm:$0xf]
    %v1359 = vld [vmem:[#allocation8 + $0x4] sm:$0xf]
    %v1360 = vld [vmem:[#allocation8 + $0x8] sm:$0xf]
    %v1361 = vld [vmem:[#allocation8 + $0xc] sm:$0xf]
    %v1362 = vld [vmem:[#allocation8 + $0x10] sm:$0xf]
    %v1363 = vld [vmem:[#allocation8 + $0x14] sm:$0xf]
    %v1364 = vld [vmem:[#allocation8 + $0x18] sm:$0xf]
    %v1365 = vld [vmem:[#allocation8 + $0x1c] sm:$0xf]
    %v1366 = vld [vmem:[#allocation8 + $0x20] sm:$0xf]
    %v1367 = vld [vmem:[#allocation8 + $0x24] sm:$0xf]
    %v1368 = vld [vmem:[#allocation8 + $0x28] sm:$0xf]
    %v1369 = vld [vmem:[#allocation8 + $0x2c] sm:$0xf]
    %v1370 = vld [vmem:[#allocation8 + $0x30] sm:$0xf]
    %v1371 = vld [vmem:[#allocation8 + $0x34] sm:$0xf]
    %v1372 = vld [vmem:[#allocation8 + $0x38] sm:$0xf]
    %v1373 = vld [vmem:[#allocation8 + $0x3c] sm:$0xf]
    %v1374 = vld [vmem:[#allocation8 + $0x40] sm:$0xf]
    %v1375 = vld [vmem:[#allocation8 + $0x44] sm:$0xf]
    %v1376 = vld [vmem:[#allocation8 + $0x48] sm:$0xf]
    %v1377 = vld [vmem:[#allocation8 + $0x4c] sm:$0xf]
    %v1378 = vld [vmem:[#allocation8 + $0x50] sm:$0xf]
    %v1379 = vld [vmem:[#allocation8 + $0x54] sm:$0xf]
    %v1380 = vld [vmem:[#allocation8 + $0x58] sm:$0xf]
    %v1381 = vld [vmem:[#allocation8 + $0x5c] sm:$0xf]
    %v1382 = vld [vmem:[#allocation8 + $0x60] sm:$0xf]
    %v1383 = vld [vmem:[#allocation8 + $0x64] sm:$0xf]
    %v1384 = vld [vmem:[#allocation8 + $0x68] sm:$0xf]
    %v1385 = vld [vmem:[#allocation8 + $0x6c] sm:$0xf]
    %v1386 = vld [vmem:[#allocation8 + $0x70] sm:$0xf]
    %v1387 = vld [vmem:[#allocation8 + $0x74] sm:$0xf]
    %v1388 = vld [vmem:[#allocation8 + $0x78] sm:$0xf]
    %v1389 = vld [vmem:[#allocation8 + $0x7c] sm:$0xf]
    %v1422 = vunpack.c.l.b16 %v1358
    %v1423 = vunpack.c.l.b16 %v1359
    %v1424 = vunpack.c.l.b16 %v1360
    %v1425 = vunpack.c.l.b16 %v1361
    %v1426 = vunpack.c.l.b16 %v1362
    %v1427 = vunpack.c.l.b16 %v1363
    %v1428 = vunpack.c.l.b16 %v1364
    %v1429 = vunpack.c.l.b16 %v1365
    %v1430 = vunpack.c.l.b16 %v1366
    %v1431 = vunpack.c.l.b16 %v1367
    %v1432 = vunpack.c.l.b16 %v1368
    %v1433 = vunpack.c.l.b16 %v1369
    %v1434 = vunpack.c.l.b16 %v1370
    %v1435 = vunpack.c.l.b16 %v1371
    %v1436 = vunpack.c.l.b16 %v1372
    %v1437 = vunpack.c.l.b16 %v1373
    %v1438 = vunpack.c.l.b16 %v1374
    %v1439 = vunpack.c.l.b16 %v1375
    %v1440 = vunpack.c.l.b16 %v1376
    %v1441 = vunpack.c.l.b16 %v1377
    %v1442 = vunpack.c.l.b16 %v1378
    %v1443 = vunpack.c.l.b16 %v1379
    %v1444 = vunpack.c.l.b16 %v1380
    %v1445 = vunpack.c.l.b16 %v1381
    %v1446 = vunpack.c.l.b16 %v1382
    %v1447 = vunpack.c.l.b16 %v1383
    %v1448 = vunpack.c.l.b16 %v1384
    %v1449 = vunpack.c.l.b16 %v1385
    %v1450 = vunpack.c.l.b16 %v1386
    %v1451 = vunpack.c.l.b16 %v1387
    %v1452 = vunpack.c.l.b16 %v1388
    %v1453 = vunpack.c.l.b16 %v1389
    %v1454 = vpack.c.b16 %v1423, %v1422
    %v1455 = vpack.c.b16 %v1425, %v1424
    %v1456 = vpack.c.b16 %v1427, %v1426
    %v1457 = vpack.c.b16 %v1429, %v1428
    %v1458 = vpack.c.b16 %v1431, %v1430
    %v1459 = vpack.c.b16 %v1433, %v1432
    %v1460 = vpack.c.b16 %v1435, %v1434
    %v1461 = vpack.c.b16 %v1437, %v1436
    %v1462 = vpack.c.b16 %v1439, %v1438
    %v1463 = vpack.c.b16 %v1441, %v1440
    %v1464 = vpack.c.b16 %v1443, %v1442
    %v1465 = vpack.c.b16 %v1445, %v1444
    %v1466 = vpack.c.b16 %v1447, %v1446
    %v1467 = vpack.c.b16 %v1449, %v1448
    %v1468 = vpack.c.b16 %v1451, %v1450
    %v1469 = vpack.c.b16 %v1453, %v1452
    %1486 = vmatprep.subr.bf16.mxu0 0
    %1487 = vmatpush1.bf16.msra.mxu0 %v1454
    %1488 = vmatprep.subr.bf16.mxu0 0
    %1489 = vmatpush1.bf16.msra.mxu0 %v1455
    %1490 = vmatprep.subr.bf16.mxu0 0
    %1491 = vmatpush1.bf16.msra.mxu0 %v1456
    %1492 = vmatprep.subr.bf16.mxu0 0
    %1493 = vmatpush1.bf16.msra.mxu0 %v1457
    %1494 = vmatprep.subr.bf16.mxu0 0
    %1495 = vmatpush1.bf16.msra.mxu0 %v1458
    %1496 = vmatprep.subr.bf16.mxu0 0
    %1497 = vmatpush1.bf16.msra.mxu0 %v1459
    %1498 = vmatprep.subr.bf16.mxu0 0
    %1499 = vmatpush1.bf16.msra.mxu0 %v1460
    %1500 = vmatprep.subr.bf16.mxu0 0
    %1501 = vmatpush1.bf16.msra.mxu0 %v1461
    %1502 = vmatprep.subr.bf16.mxu0 0
    %1503 = vmatpush1.bf16.msra.mxu0 %v1462
    %1504 = vmatprep.subr.bf16.mxu0 0
    %1505 = vmatpush1.bf16.msra.mxu0 %v1463
    %1506 = vmatprep.subr.bf16.mxu0 0
    %1507 = vmatpush1.bf16.msra.mxu0 %v1464
    %1508 = vmatprep.subr.bf16.mxu0 0
    %1509 = vmatpush1.bf16.msra.mxu0 %v1465
    %1510 = vmatprep.subr.bf16.mxu0 0
    %1511 = vmatpush1.bf16.msra.mxu0 %v1466
    %1512 = vmatprep.subr.bf16.mxu0 0
    %1513 = vmatpush1.bf16.msra.mxu0 %v1467
    %1514 = vmatprep.subr.bf16.mxu0 0
    %1515 = vmatpush1.bf16.msra.mxu0 %v1468
    %1516 = vmatprep.subr.bf16.mxu0 0
    %1517 = vmatpush1.bf16.msra.mxu0 %v1469
    %1518 = vmatprep.mubr.bf16.mxu0 %v1357
    %1519 = vmatmul.mubr.bf16.gmra.mrb[0].mxu0 %v1356
    %v1520 = vpop.f32.mrb[0].mxu0
    %v1521 = vadd.f32 0.0, %v1520
    %v1522 = vpop.f32.mrb[0].mxu0
    %v1523 = vpop.f32.mrb[0].mxu0
    %v1524 = vpop.f32.mrb[0].mxu0
    %1525 = vdwg.mxu0
    %v1526 = vld [vmem:[#allocation11 + $0x4] ss:$0 sm:$0xff]
    %v1527 = vld [vmem:[#allocation11 + $0x5] ss:$0 sm:$0xff]
    %v1528 = vrot.slane %v1521, 4
    %v1529 = vadd.f32 %v1521, %v1528
    %v1530 = vrot.slane %v1529, 2
    %v1531 = vadd.f32 %v1529, %v1530
    %v1532 = vrot.slane %v1531, 1
    %v1533 = vadd.f32 %v1531, %v1532
    %v1534 = vmul.f32 %v1521, %v1521
    %v1535 = vrot.slane %v1534, 4
    %v1536 = vadd.f32 %v1534, %v1535
    %v1537 = vrot.slane %v1536, 2
    %v1538 = vadd.f32 %v1536, %v1537
    %v1539 = vrot.slane %v1538, 1
    %v1540 = vadd.f32 %v1538, %v1539
    %v1541 = vmul.f32 %v1533, 0.125
    %v1542 = vmul.f32 %v1540, 0.125
    %v1543 = vmul.f32 %v1541, %v1541
    %v1544 = vsub.f32 %v1542, %v1543
    %v1545 = vmax.f32 %v1544, 0.0
    %v1546 = vadd.f32 %v1545, 1e-05
    %v1547 = vrsqrt.pop %v1546
    %v1548 = vmul.f32 %v1526, %v1547
    %v1549 = vmul.f32 %v1541, %v1548
    %v1550 = vsub.f32 %v1527, %v1549
    %v1551 = vmul.f32 %v1521, %v1548
    %v1552 = vadd.f32 %v1551, %v1550
    %v1553 = vmax.f32 %v1552, 0.0
    %v1554 = vpack.c.bf16 %v1553, %v1553
    %v1555 = vld [vmem:[#allocation10] sm:$0xf]
    %v1556 = vld [vmem:[#allocation10 + $0x4] sm:$0xf]
    %v1557 = vld [vmem:[#allocation10 + $0x8] sm:$0xf]
    %v1558 = vld [vmem:[#allocation10 + $0xc] sm:$0xf]
    %v1559 = vld [vmem:[#allocation10 + $0x10] sm:$0xf]
    %v1560 = vld [vmem:[#allocation10 + $0x14] sm:$0xf]
    %v1561 = vld [vmem:[#allocation10 + $0x18] sm:$0xf]
    %v1562 = vld [vmem:[#allocation10 + $0x1c] sm:$0xf]
    %v1563 = vld [vmem:[#allocation10 + $0x20] sm:$0xf]
    %v1564 = vld [vmem:[#allocation10 + $0x24] sm:$0xf]
    %v1565 = vld [vmem:[#allocation10 + $0x28] sm:$0xf]
    %v1566 = vld [vmem:[#allocation10 + $0x2c] sm:$0xf]
    %v1567 = vld [vmem:[#allocation10 + $0x30] sm:$0xf]
    %v1568 = vld [vmem:[#allocation10 + $0x34] sm:$0xf]
    %v1569 = vld [vmem:[#allocation10 + $0x38] sm:$0xf]
    %v1570 = vld [vmem:[#allocation10 + $0x3c] sm:$0xf]
    %v1571 = vld [vmem:[#allocation11 + $0x6] ss:$0 sm:$0xff]
    %v1588 = vunpack.c.l.b16 %v1555
    %v1589 = vunpack.c.l.b16 %v1556
    %v1590 = vunpack.c.l.b16 %v1557
    %v1591 = vunpack.c.l.b16 %v1558
    %v1592 = vunpack.c.l.b16 %v1559
    %v1593 = vunpack.c.l.b16 %v1560
    %v1594 = vunpack.c.l.b16 %v1561
    %v1595 = vunpack.c.l.b16 %v1562
    %v1596 = vunpack.c.l.b16 %v1563
    %v1597 = vunpack.c.l.b16 %v1564
    %v1598 = vunpack.c.l.b16 %v1565
    %v1599 = vunpack.c.l.b16 %v1566
    %v1600 = vunpack.c.l.b16 %v1567
    %v1601 = vunpack.c.l.b16 %v1568
    %v1602 = vunpack.c.l.b16 %v1569
    %v1603 = vunpack.c.l.b16 %v1570
    %v1604 = vpack.c.b16 %v1589, %v1588
    %v1605 = vpack.c.b16 %v1591, %v1590
    %v1606 = vpack.c.b16 %v1593, %v1592
    %v1607 = vpack.c.b16 %v1595, %v1594
    %v1608 = vpack.c.b16 %v1597, %v1596
    %v1609 = vpack.c.b16 %v1599, %v1598
    %v1610 = vpack.c.b16 %v1601, %v1600
    %v1611 = vpack.c.b16 %v1603, %v1602
    %1620 = vmatprep.subr.bf16.mxu0 0
    %1621 = vmatpush1.bf16.msra.mxu0 %v1604
    %1622 = vmatprep.subr.bf16.mxu0 0
    %1623 = vmatpush1.bf16.msra.mxu0 %v1605
    %1624 = vmatprep.subr.bf16.mxu0 0
    %1625 = vmatpush1.bf16.msra.mxu0 %v1606
    %1626 = vmatprep.subr.bf16.mxu0 0
    %1627 = vmatpush1.bf16.msra.mxu0 %v1607
    %1628 = vmatprep.subr.bf16.mxu0 0
    %1629 = vmatpush1.bf16.msra.mxu0 %v1608
    %1630 = vmatprep.subr.bf16.mxu0 0
    %1631 = vmatpush1.bf16.msra.mxu0 %v1609
    %1632 = vmatprep.subr.bf16.mxu0 0
    %1633 = vmatpush1.bf16.msra.mxu0 %v1610
    %1634 = vmatprep.subr.bf16.mxu0 0
    %1635 = vmatpush1.bf16.msra.mxu0 %v1611
    %1636 = vmatprep.subr.bf16.mxu0 0
    %1637 = vmatpush1.bf16.msra.mxu0 0
    %1638 = vmatprep.subr.bf16.mxu0 0
    %1639 = vmatpush1.bf16.msra.mxu0 0
    %1640 = vmatprep.subr.bf16.mxu0 0
    %1641 = vmatpush1.bf16.msra.mxu0 0
    %1642 = vmatprep.subr.bf16.mxu0 0
    %1643 = vmatpush1.bf16.msra.mxu0 0
    %1644 = vmatprep.subr.bf16.mxu0 0
    %1645 = vmatpush1.bf16.msra.mxu0 0
    %1646 = vmatprep.subr.bf16.mxu0 0
    %1647 = vmatpush1.bf16.msra.mxu0 0
    %1648 = vmatprep.subr.bf16.mxu0 0
    %1649 = vmatpush1.bf16.msra.mxu0 0
    %1650 = vmatprep.subr.bf16.mxu0 0
    %1651 = vmatpush1.bf16.msra.mxu0 0
    %1652 = vmatprep.mubr.bf16.mxu0 0
    %1653 = vmatmul.mubr.bf16.gmra.mrb[0].mxu0 %v1554
    %v1654 = vpop.f32.mrb[0].mxu0
    %v1655 = vadd.f32 %v1571, %v1654
    %v1656 = vpop.f32.mrb[0].mxu0
    %v1657 = vpop.f32.mrb[0].mxu0
    %v1658 = vpop.f32.mrb[0].mxu0
    %1659 = vdwg.mxu0
    %1660 = vst [vmem:[#allocation13] sm:$0xff] %v1655
    // Predicated region
    $region50: #{tpu_custom_call.1} parent=1 // pred_check
      _
    $region51: #{tpu_custom_call.1} parent=1 // pred_check_branch
      %1662 = sbr.rel (0) target = $region53
    $region52: #{tpu_custom_call.1} parent=1 // pred_region
      %s1664 = ssub.s32 128, 128
      %1665 = vsyncadd [#allocation4], %s1664
      %s1667 = sshll.u32 [#allocation13], 4
      %s1668 = int_to_ptr.vmem [resolvable:$true] %s1667
      %1670 = dma.vmem_to_hbm [thread:$0]  %s1668, 128, %s6, [#allocation4]
    $region53: #{tpu_custom_call.1} parent=1 // pred_fallthru
      _
    // Predicated region
    $region54: #{tpu_custom_call.1} parent=1 // pred_check
      _
    $region55: #{tpu_custom_call.1} parent=1 // pred_check_branch
      %1672 = sbr.rel (0) target = $region57
    $region56: #{tpu_custom_call.1} parent=1 // pred_region
      %1673 = dma.done [#allocation4], 128
    $region57: #{tpu_custom_call.1} parent=1 // pred_fallthru
      _
    %1674 = vsyncpa [#allocation3], 1
    %1675 = vsyncpa [#allocation6], 1
    %1676 = vsyncpa [#allocation9], 1
    %1677 = vsyncpa [#allocation12], 1
    %1678 = vsyncpa [#allocation4], 1

</llo_original>
